<compile_context>
chip_gen: v6e
topology: v6e:2x2x1
jax: 0.10.0
libtpu: 0.0.40
codegen_flags: <defaults>
</compile_context>

<pallas_src>
import functools

import jax
import jax.numpy as jnp
from jax.experimental import pallas as pl
from jax.experimental.pallas import tpu as pltpu


# Safe on all generations: v5e/v6e have 128 MiB physical VMEM, v7x has 64 MiB
# per TensorCore; a 32 MiB scoped limit fits everywhere with headroom.
_VMEM_LIMIT_BYTES = 32 << 20
# Mem-bound roofline is reached at ~1-2K lanes; bigger tiles buy nothing.
_MAX_TILE_M = 2048


def _vmem_budget_bytes():
    """Byte budget for streamed, double-buffered (Cb, TM) tiles + intermediates."""
    try:
        cap = pltpu.get_tpu_info().vmem_capacity_bytes
    except Exception:  # interpret mode / older jax: assume v7x (smallest VMEM)
        cap = 64 << 20
    return min(cap // 4, 16 << 20)


def _fold_factor(n, c, stream_dtype):
    """Largest divisor of N keeping Nb*C within one vreg's sublane pack."""
    pack = 8 * (4 // jnp.dtype(stream_dtype).itemsize)  # 8 for f32, 16 for bf16
    target = max(1, pack // max(c, 1))
    nb = 1
    for d in range(1, min(n, target) + 1):
        if n % d == 0:
            nb = d
    return nb


def _block_diag(w, nb):
    # diag(W, W, ..., W) of shape (nb*C_out, nb*C_in); built once in the wrapper.
    return jnp.kron(jnp.eye(nb, dtype=w.dtype), w)


def _round_up(v, m):
    return ((v + m - 1) // m) * m


def _pick_tile_m(m, cb, folded_n, n_streamed, stream_itemsize, n_interm=1):
    """Lane tile (multiple of 128) from a VMEM byte budget; tail block is masked.

    n_streamed (Cb, TM) tiles move HBM<->VMEM per grid step (double-buffered by
    the pipeline); n_interm f32 (Cb, TM) intermediates live inside the kernel.
    """
    if m <= 128:
        return m  # full-extent lane block (block dim == array dim is legal)
    budget = _vmem_budget_bytes()
    per_lane = 2 * n_streamed * cb * stream_itemsize + n_interm * cb * 4
    tm = min(_MAX_TILE_M, max(128, (budget // per_lane) // 128 * 128))
    if folded_n < 2:
        # v7x has 2 TensorCores: keep >= 2 'parallel' grid steps even when the
        # folded batch axis alone cannot provide them.
        tm = min(tm, max(128, _round_up((m + 1) // 2, 128)))
    # Never let a block exceed the array extent; cdiv grid masks the tail.
    return max(128, min(tm, (m // 128) * 128))


# ---------------------------------------------------------------------------
# Kernel 1: FrequencyFFC hot path on a (Cb, TM) tile
#   out = relu( W2 @ relu( W1 @ xf + b1 ) + b2 )
# Streamed tiles may be bf16; accumulation is f32; M is lane-dense.
# (At this tiny Cb an unrolled VPU broadcast-FMA would also work, but the
#  kernel is HBM-bound so the MXU path is kept for simplicity.)
# ---------------------------------------------------------------------------
def _ffc_kernel(xf_ref, w1_ref, b1_ref, w2_ref, b2_ref, o_ref):
    xf = xf_ref[...].astype(jnp.float32)                         # (Cb, TM)
    h = jnp.dot(w1_ref[...], xf, preferred_element_type=jnp.float32)
    h = jnp.maximum(h + b1_ref[...], 0.0)                        # bias (Cb,1) bcast
    o = jnp.dot(w2_ref[...], h, preferred_element_type=jnp.float32)
    o_ref[...] = jnp.maximum(o + b2_ref[...], 0.0).astype(o_ref.dtype)


# ---------------------------------------------------------------------------
# Kernel 2: final 1x1 conv over the channel-concatenated tensor, fused via
# split weights:   out = Wa @ x + Wb @ freq_out + bf
# ---------------------------------------------------------------------------
def _final_conv_kernel(x_ref, f_ref, wa_ref, wb_ref, bf_ref, o_ref):
    acc = jnp.dot(wa_ref[...], x_ref[...].astype(jnp.float32),
                  preferred_element_type=jnp.float32)
    acc = acc + jnp.dot(wb_ref[...], f_ref[...].astype(jnp.float32),
                        preferred_element_type=jnp.float32)
    o_ref[...] = (acc + bf_ref[...]).astype(o_ref.dtype)


def _run_ffc(xf, w1, b1, w2, b2, out_dtype):
    nf, cb, m = xf.shape
    in_isz = jnp.dtype(xf.dtype).itemsize
    out_isz = jnp.dtype(out_dtype).itemsize
    tm = _pick_tile_m(m, cb, folded_n=nf, n_streamed=2,
                      stream_itemsize=max(in_isz, out_isz), n_interm=1)
    grid = (nf, pl.cdiv(m, tm))
    flops = 4 * nf * m * cb * cb
    bytes_accessed = nf * cb * m * (in_isz + out_isz) + (2 * cb * cb + 2 * cb) * 4
    return pl.pallas_call(
        _ffc_kernel,
        out_shape=jax.ShapeDtypeStruct((nf, cb, m), out_dtype),
        grid_spec=pltpu.PrefetchScalarGridSpec(
            num_scalar_prefetch=0,
            grid=grid,
            in_specs=[
                pl.BlockSpec((None, cb, tm), lambda b, j: (b, 0, j)),  # xf
                pl.BlockSpec((cb, cb), lambda b, j: (0, 0)),           # W1 (blkdiag)
                pl.BlockSpec((cb, 1), lambda b, j: (0, 0)),            # b1
                pl.BlockSpec((cb, cb), lambda b, j: (0, 0)),           # W2 (blkdiag)
                pl.BlockSpec((cb, 1), lambda b, j: (0, 0)),            # b2
            ],
            out_specs=pl.BlockSpec((None, cb, tm), lambda b, j: (b, 0, j)),
        ),
        compiler_params=pltpu.CompilerParams(
            dimension_semantics=("parallel", "parallel"),
            vmem_limit_bytes=_VMEM_LIMIT_BYTES),
        cost_estimate=pl.CostEstimate(flops=flops, transcendentals=0,
                                      bytes_accessed=bytes_accessed),
    )(xf, w1, b1, w2, b2)


def _run_final_conv(x, f, wa, wb, bf, out_dtype):
    nf, cb, m = x.shape
    in_isz = jnp.dtype(x.dtype).itemsize
    out_isz = jnp.dtype(out_dtype).itemsize
    tm = _pick_tile_m(m, cb, folded_n=nf, n_streamed=3,
                      stream_itemsize=max(in_isz, out_isz), n_interm=1)
    grid = (nf, pl.cdiv(m, tm))
    flops = 4 * nf * m * cb * cb
    bytes_accessed = nf * cb * m * (2 * in_isz + out_isz) + (2 * cb * cb + cb) * 4
    return pl.pallas_call(
        _final_conv_kernel,
        out_shape=jax.ShapeDtypeStruct((nf, cb, m), out_dtype),
        grid_spec=pltpu.PrefetchScalarGridSpec(
            num_scalar_prefetch=0,
            grid=grid,
            in_specs=[
                pl.BlockSpec((None, cb, tm), lambda b, j: (b, 0, j)),  # x
                pl.BlockSpec((None, cb, tm), lambda b, j: (b, 0, j)),  # freq_out
                pl.BlockSpec((cb, cb), lambda b, j: (0, 0)),           # Wa (blkdiag)
                pl.BlockSpec((cb, cb), lambda b, j: (0, 0)),           # Wb (blkdiag)
                pl.BlockSpec((cb, 1), lambda b, j: (0, 0)),            # bf
            ],
            out_specs=pl.BlockSpec((None, cb, tm), lambda b, j: (b, 0, j)),
        ),
        compiler_params=pltpu.CompilerParams(
            dimension_semantics=("parallel", "parallel"),
            vmem_limit_bytes=_VMEM_LIMIT_BYTES),
        cost_estimate=pl.CostEstimate(flops=flops, transcendentals=0,
                                      bytes_accessed=bytes_accessed),
    )(x, f, wa, wb, bf)


# ---------------------------------------------------------------------------
# Parameter construction (mirrors nn.Conv2d 1x1 shapes):
#   conv1 / conv2:   weight (C, C, 1, 1),  bias (C,)
#   final_conv:      weight (C, 2C, 1, 1), bias (C,)
# Stored as (C_out, C_in) weights and (C_out, 1) biases (broadcast over lanes).
# ---------------------------------------------------------------------------
def make_params(num_channels, key):
    c = num_channels
    ks = jax.random.split(key, 6)

    def u(k, shape, fan_in):
        bound = 1.0 / jnp.sqrt(float(fan_in))
        return jax.random.uniform(k, shape, jnp.float32, -bound, bound)

    return dict(
        w1=u(ks[0], (c, c), c), b1=u(ks[1], (c, 1), c),
        w2=u(ks[2], (c, c), c), b2=u(ks[3], (c, 1), c),
        wf=u(ks[4], (c, 2 * c), 2 * c), bf=u(ks[5], (c, 1), 2 * c))


# ---------------------------------------------------------------------------
# Full forward: NCHW in, NCHW out (matches PyTorch semantics).
# ---------------------------------------------------------------------------
@functools.partial(jax.jit, static_argnames=("stream_dtype",))
def spatial_frequency_block(x, params, *, stream_dtype=jnp.float32):
    n, c, h, w = x.shape
    wr = w // 2 + 1
    hwr, hw = h * wr, h * w

    # Batch-fold so the second-minor (sublane) block dim is a full vreg.
    nb = _fold_factor(n, c, stream_dtype)
    cb = nb * c
    nf = n // nb

    # Half-spectrum trick: Re(fft2(real x)) is 2-D even-symmetric and the FFC
    # is elementwise in frequency, so real(ifft2(.)) == irfft2 of the half.
    xf = jnp.real(jnp.fft.rfft2(x.astype(jnp.float32), axes=(-2, -1)))
    xf = xf.astype(stream_dtype).reshape(nf, cb, hwr)            # zero-cost view

    w1b = _block_diag(params["w1"], nb)
    b1b = jnp.tile(params["b1"], (nb, 1))
    w2b = _block_diag(params["w2"], nb)
    b2b = jnp.tile(params["b2"], (nb, 1))

    g = _run_ffc(xf, w1b, b1b, w2b, b2b, out_dtype=stream_dtype)
    g = g.reshape(n, c, h, wr).astype(jnp.complex64)

    freq_out = jnp.fft.irfft2(g, s=(h, w), axes=(-2, -1)).astype(jnp.float32)

    # final 1x1 conv on cat([x, freq_out], channel), fused via split weights.
    wa = _block_diag(params["wf"][:, :c], nb)     # acts on x
    wb = _block_diag(params["wf"][:, c:], nb)     # acts on freq_out
    bfb = jnp.tile(params["bf"], (nb, 1))

    x_s = x.astype(stream_dtype).reshape(nf, cb, hw)
    f_s = freq_out.astype(stream_dtype).reshape(nf, cb, hw)
    out = _run_final_conv(x_s, f_s, wa, wb, bfb, out_dtype=jnp.float32)
    return out.reshape(n, c, h, w)


# ---------------------------------------------------------------------------
# Pure-JAX reference (full-spectrum, all f32) for the sanity check.
# ---------------------------------------------------------------------------
def reference(x, params):
    n, c, h, w = x.shape
    xfreq = jnp.fft.fft2(x.astype(jnp.float32), axes=(-2, -1)).astype(jnp.complex64)
    xr = jnp.real(xfreq).astype(jnp.float32)
    h1 = jnp.maximum(jnp.einsum('oi,nihw->nohw', params["w1"], xr)
                     + params["b1"].reshape(1, c, 1, 1), 0.0)
    ffc = jnp.maximum(jnp.einsum('oi,nihw->nohw', params["w2"], h1)
                      + params["b2"].reshape(1, c, 1, 1), 0.0)
    fo = jnp.real(jnp.fft.ifft2(ffc.astype(jnp.complex64), axes=(-2, -1)))
    cat = jnp.concatenate([x.astype(jnp.float32), fo.astype(jnp.float32)], axis=1)
    return (jnp.einsum('oi,nihw->nohw', params["wf"], cat)
            + params["bf"].reshape(1, c, 1, 1))


def _pick_stream_dtype():
    # bf16 streaming only where the VPU handles bf16 natively (v6e / v7x);
    # keep f32 on v5e and older.
    try:
        kind = jax.devices()[0].device_kind.lower()
    except Exception:
        return jnp.float32
    if ("v6" in kind) or ("v7" in kind) or ("7x" in kind):
        return jnp.bfloat16
    return jnp.float32


if __name__ == "__main__":
    key = jax.random.PRNGKey(0)
    k_x, k_p = jax.random.split(key)

    N, C, H, W = 2, 4, 16, 16
    x = jax.random.normal(k_x, (N, C, H, W), dtype=jnp.float32)
    params = make_params(C, k_p)

    stream_dtype = _pick_stream_dtype()
    out = spatial_frequency_block(x, params, stream_dtype=stream_dtype)
    out = jax.block_until_ready(out)

    ref = reference(x, params)
    if stream_dtype == jnp.bfloat16:
        atol = rtol = 5e-2      # bf16-streamed activations
    else:
        atol = rtol = 1e-3      # f32 end-to-end (half-spectrum FFT only)
    assert out.shape == (N, C, H, W), out.shape
    assert jnp.allclose(out, ref, atol=atol, rtol=rtol), (
        float(jnp.max(jnp.abs(out - ref))))

    print("KERNEL_OK")
</pallas_src>

<mosaic_0001>
module attributes {stable_mosaic.version = 11 : i64} {
  func.func @_ffc_kernel(%arg0: i32, %arg1: i32, %arg2: memref<1x8x128xf32, #tpu.memory_space<vmem>>, %arg3: memref<8x8xf32, #tpu.memory_space<vmem>>, %arg4: memref<8x1xf32, #tpu.memory_space<vmem>>, %arg5: memref<8x8xf32, #tpu.memory_space<vmem>>, %arg6: memref<8x1xf32, #tpu.memory_space<vmem>>, %arg7: memref<1x8x128xf32, #tpu.memory_space<vmem>>) attributes {dimension_semantics = [#tpu.dimension_semantics<parallel>, #tpu.dimension_semantics<parallel>], iteration_bounds = array<i64: 1, 2>, scalar_prefetch = 0 : i64, scratch_operands = 0 : i64, tpu.core_type = #tpu.core_type<tc>, window_params = [{transform_indices = @transform_0, window_bounds = array<i64: 1, 8, 128>}, {pipeline_mode = #tpu.pipeline_mode<synchronous>, transform_indices = @transform_1, window_bounds = array<i64: 8, 8>}, {pipeline_mode = #tpu.pipeline_mode<synchronous>, transform_indices = @transform_2, window_bounds = array<i64: 8, 1>}, {pipeline_mode = #tpu.pipeline_mode<synchronous>, transform_indices = @transform_3, window_bounds = array<i64: 8, 8>}, {pipeline_mode = #tpu.pipeline_mode<synchronous>, transform_indices = @transform_4, window_bounds = array<i64: 8, 1>}, {transform_indices = @transform_5, window_bounds = array<i64: 1, 8, 128>}]} {
    %c0 = arith.constant 0 : index
    %c0_0 = arith.constant 0 : index
    %c0_1 = arith.constant 0 : index
    %0 = vector.load %arg2[%c0, %c0_0, %c0_1] : memref<1x8x128xf32, #tpu.memory_space<vmem>>, vector<1x8x128xf32>
    %1 = vector.shape_cast %0 : vector<1x8x128xf32> to vector<8x128xf32>
    %c0_2 = arith.constant 0 : index
    %c0_3 = arith.constant 0 : index
    %2 = vector.load %arg3[%c0_2, %c0_3] : memref<8x8xf32, #tpu.memory_space<vmem>>, vector<8x8xf32>
    %cst = arith.constant dense<0.000000e+00> : vector<8x128xf32>
    %3 = tpu.matmul %2, %1, %cst {dimension_numbers = #tpu.dot_dimension_numbers<[1], [0], [0], [1], [0, 0, 1, 1], [], []>} : vector<8x8xf32>, vector<8x128xf32>, vector<8x128xf32> -> vector<8x128xf32>
    %c0_4 = arith.constant 0 : index
    %c0_5 = arith.constant 0 : index
    %4 = vector.load %arg4[%c0_4, %c0_5] : memref<8x1xf32, #tpu.memory_space<vmem>>, vector<8x1xf32>
    %5 = vector.broadcast %4 : vector<8x1xf32> to vector<8x128xf32>
    %6 = arith.addf %3, %5 : vector<8x128xf32>
    %cst_6 = arith.constant 0.000000e+00 : f32
    %7 = vector.broadcast %cst_6 : f32 to vector<8x128xf32>
    %8 = arith.maximumf %6, %7 : vector<8x128xf32>
    %c0_7 = arith.constant 0 : index
    %c0_8 = arith.constant 0 : index
    %9 = vector.load %arg5[%c0_7, %c0_8] : memref<8x8xf32, #tpu.memory_space<vmem>>, vector<8x8xf32>
    %cst_9 = arith.constant dense<0.000000e+00> : vector<8x128xf32>
    %10 = tpu.matmul %9, %8, %cst_9 {dimension_numbers = #tpu.dot_dimension_numbers<[1], [0], [0], [1], [0, 0, 1, 1], [], []>} : vector<8x8xf32>, vector<8x128xf32>, vector<8x128xf32> -> vector<8x128xf32>
    %c0_10 = arith.constant 0 : index
    %c0_11 = arith.constant 0 : index
    %11 = vector.load %arg6[%c0_10, %c0_11] : memref<8x1xf32, #tpu.memory_space<vmem>>, vector<8x1xf32>
    %12 = vector.broadcast %11 : vector<8x1xf32> to vector<8x128xf32>
    %13 = arith.addf %10, %12 : vector<8x128xf32>
    %cst_12 = arith.constant 0.000000e+00 : f32
    %14 = vector.broadcast %cst_12 : f32 to vector<8x128xf32>
    %15 = arith.maximumf %13, %14 : vector<8x128xf32>
    %c0_13 = arith.constant 0 : index
    %c0_14 = arith.constant 0 : index
    %c0_15 = arith.constant 0 : index
    %16 = vector.load %arg7[%c0_13, %c0_14, %c0_15] : memref<1x8x128xf32, #tpu.memory_space<vmem>>, vector<1x8x128xf32>
    %17 = vector.shape_cast %16 : vector<1x8x128xf32> to vector<8x128xf32>
    %18 = vector.shape_cast %15 : vector<8x128xf32> to vector<1x8x128xf32>
    tpu.vector_store %arg7[%c0_13, %c0_14, %c0_15], %18 {strides = array<i32>} : memref<1x8x128xf32, #tpu.memory_space<vmem>>, vector<1x8x128xf32>,
    return
  }
  func.func @transform_0(%arg0: i32, %arg1: i32) -> (i32, i32, i32) {
    %c0_i32 = arith.constant 0 : i32
    %c0_i32_0 = arith.constant 0 : i32
    return %arg0, %c0_i32, %arg1 : i32, i32, i32
  }
  func.func @transform_1(%arg0: i32, %arg1: i32) -> (i32, i32) {
    %c0_i32 = arith.constant 0 : i32
    %c0_i32_0 = arith.constant 0 : i32
    %c0_i32_1 = arith.constant 0 : i32
    return %c0_i32, %c0_i32_0 : i32, i32
  }
  func.func @transform_2(%arg0: i32, %arg1: i32) -> (i32, i32) {
    %c0_i32 = arith.constant 0 : i32
    %c0_i32_0 = arith.constant 0 : i32
    %c0_i32_1 = arith.constant 0 : i32
    return %c0_i32, %c0_i32_0 : i32, i32
  }
  func.func @transform_3(%arg0: i32, %arg1: i32) -> (i32, i32) {
    %c0_i32 = arith.constant 0 : i32
    %c0_i32_0 = arith.constant 0 : i32
    %c0_i32_1 = arith.constant 0 : i32
    return %c0_i32, %c0_i32_0 : i32, i32
  }
  func.func @transform_4(%arg0: i32, %arg1: i32) -> (i32, i32) {
    %c0_i32 = arith.constant 0 : i32
    %c0_i32_0 = arith.constant 0 : i32
    %c0_i32_1 = arith.constant 0 : i32
    return %c0_i32, %c0_i32_0 : i32, i32
  }
  func.func @transform_5(%arg0: i32, %arg1: i32) -> (i32, i32, i32) {
    %c0_i32 = arith.constant 0 : i32
    %c0_i32_0 = arith.constant 0 : i32
    return %arg0, %c0_i32, %arg1 : i32, i32, i32
  }
}

module attributes {stable_mosaic.version = 11 : i64} {
  func.func @_final_conv_kernel(%arg0: i32, %arg1: i32, %arg2: memref<1x8x128xf32, #tpu.memory_space<vmem>>, %arg3: memref<1x8x128xf32, #tpu.memory_space<vmem>>, %arg4: memref<8x8xf32, #tpu.memory_space<vmem>>, %arg5: memref<8x8xf32, #tpu.memory_space<vmem>>, %arg6: memref<8x1xf32, #tpu.memory_space<vmem>>, %arg7: memref<1x8x128xf32, #tpu.memory_space<vmem>>) attributes {dimension_semantics = [#tpu.dimension_semantics<parallel>, #tpu.dimension_semantics<parallel>], iteration_bounds = array<i64: 1, 2>, scalar_prefetch = 0 : i64, scratch_operands = 0 : i64, tpu.core_type = #tpu.core_type<tc>, window_params = [{transform_indices = @transform_0, window_bounds = array<i64: 1, 8, 128>}, {transform_indices = @transform_1, window_bounds = array<i64: 1, 8, 128>}, {pipeline_mode = #tpu.pipeline_mode<synchronous>, transform_indices = @transform_2, window_bounds = array<i64: 8, 8>}, {pipeline_mode = #tpu.pipeline_mode<synchronous>, transform_indices = @transform_3, window_bounds = array<i64: 8, 8>}, {pipeline_mode = #tpu.pipeline_mode<synchronous>, transform_indices = @transform_4, window_bounds = array<i64: 8, 1>}, {transform_indices = @transform_5, window_bounds = array<i64: 1, 8, 128>}]} {
    %c0 = arith.constant 0 : index
    %c0_0 = arith.constant 0 : index
    %0 = vector.load %arg4[%c0, %c0_0] : memref<8x8xf32, #tpu.memory_space<vmem>>, vector<8x8xf32>
    %c0_1 = arith.constant 0 : index
    %c0_2 = arith.constant 0 : index
    %c0_3 = arith.constant 0 : index
    %1 = vector.load %arg2[%c0_1, %c0_2, %c0_3] : memref<1x8x128xf32, #tpu.memory_space<vmem>>, vector<1x8x128xf32>
    %2 = vector.shape_cast %1 : vector<1x8x128xf32> to vector<8x128xf32>
    %cst = arith.constant dense<0.000000e+00> : vector<8x128xf32>
    %3 = tpu.matmul %0, %2, %cst {dimension_numbers = #tpu.dot_dimension_numbers<[1], [0], [0], [1], [0, 0, 1, 1], [], []>} : vector<8x8xf32>, vector<8x128xf32>, vector<8x128xf32> -> vector<8x128xf32>
    %c0_4 = arith.constant 0 : index
    %c0_5 = arith.constant 0 : index
    %4 = vector.load %arg5[%c0_4, %c0_5] : memref<8x8xf32, #tpu.memory_space<vmem>>, vector<8x8xf32>
    %c0_6 = arith.constant 0 : index
    %c0_7 = arith.constant 0 : index
    %c0_8 = arith.constant 0 : index
    %5 = vector.load %arg3[%c0_6, %c0_7, %c0_8] : memref<1x8x128xf32, #tpu.memory_space<vmem>>, vector<1x8x128xf32>
    %6 = vector.shape_cast %5 : vector<1x8x128xf32> to vector<8x128xf32>
    %cst_9 = arith.constant dense<0.000000e+00> : vector<8x128xf32>
    %7 = tpu.matmul %4, %6, %cst_9 {dimension_numbers = #tpu.dot_dimension_numbers<[1], [0], [0], [1], [0, 0, 1, 1], [], []>} : vector<8x8xf32>, vector<8x128xf32>, vector<8x128xf32> -> vector<8x128xf32>
    %8 = arith.addf %3, %7 : vector<8x128xf32>
    %c0_10 = arith.constant 0 : index
    %c0_11 = arith.constant 0 : index
    %9 = vector.load %arg6[%c0_10, %c0_11] : memref<8x1xf32, #tpu.memory_space<vmem>>, vector<8x1xf32>
    %10 = vector.broadcast %9 : vector<8x1xf32> to vector<8x128xf32>
    %11 = arith.addf %8, %10 : vector<8x128xf32>
    %c0_12 = arith.constant 0 : index
    %c0_13 = arith.constant 0 : index
    %c0_14 = arith.constant 0 : index
    %12 = vector.load %arg7[%c0_12, %c0_13, %c0_14] : memref<1x8x128xf32, #tpu.memory_space<vmem>>, vector<1x8x128xf32>
    %13 = vector.shape_cast %12 : vector<1x8x128xf32> to vector<8x128xf32>
    %14 = vector.shape_cast %11 : vector<8x128xf32> to vector<1x8x128xf32>
    tpu.vector_store %arg7[%c0_12, %c0_13, %c0_14], %14 {strides = array<i32>} : memref<1x8x128xf32, #tpu.memory_space<vmem>>, vector<1x8x128xf32>,
    return
  }
  func.func @transform_0(%arg0: i32, %arg1: i32) -> (i32, i32, i32) {
    %c0_i32 = arith.constant 0 : i32
    %c0_i32_0 = arith.constant 0 : i32
    return %arg0, %c0_i32, %arg1 : i32, i32, i32
  }
  func.func @transform_1(%arg0: i32, %arg1: i32) -> (i32, i32, i32) {
    %c0_i32 = arith.constant 0 : i32
    %c0_i32_0 = arith.constant 0 : i32
    return %arg0, %c0_i32, %arg1 : i32, i32, i32
  }
  func.func @transform_2(%arg0: i32, %arg1: i32) -> (i32, i32) {
    %c0_i32 = arith.constant 0 : i32
    %c0_i32_0 = arith.constant 0 : i32
    %c0_i32_1 = arith.constant 0 : i32
    return %c0_i32, %c0_i32_0 : i32, i32
  }
  func.func @transform_3(%arg0: i32, %arg1: i32) -> (i32, i32) {
    %c0_i32 = arith.constant 0 : i32
    %c0_i32_0 = arith.constant 0 : i32
    %c0_i32_1 = arith.constant 0 : i32
    return %c0_i32, %c0_i32_0 : i32, i32
  }
  func.func @transform_4(%arg0: i32, %arg1: i32) -> (i32, i32) {
    %c0_i32 = arith.constant 0 : i32
    %c0_i32_0 = arith.constant 0 : i32
    %c0_i32_1 = arith.constant 0 : i32
    return %c0_i32, %c0_i32_0 : i32, i32
  }
  func.func @transform_5(%arg0: i32, %arg1: i32) -> (i32, i32, i32) {
    %c0_i32 = arith.constant 0 : i32
    %c0_i32_0 = arith.constant 0 : i32
    return %arg0, %c0_i32, %arg1 : i32, i32, i32
  }
}

</mosaic_0001>

<llo_original>
// kernel: reverse.0
$region0: #{reverse.0}
  %s0 = inlined_call_operand.vmem [shape: f32[2,4,16,7], index: 0, kind: input, shape index: {}]
  %s1 = inlined_call_operand.vmem [shape: f32[2,4,16,7], index: 1, kind: output, shape index: {}]
  $region1: #{reverse.0} parent=0
    #allocation0 [shape = 'u8[65536]{0}', space=vmem, size = 0x10000, scoped, tag = 'operand span for operand 0']
    #allocation1 [shape = 'u8[32768]{0}', space=vmem, size = 0x8000, scoped, tag = 'operand span for operand 1']
    %s2 = scalar_lea.vmem [#allocation0], 8
    // Predicated region
    $region2: #{reverse.0} parent=1 // pred_check
      _
    $region3: #{reverse.0} parent=1 // pred_check_branch
      %4 = sbr.rel (0) target = $region5
    $region4: #{reverse.0} parent=1 // pred_region
      // Predicated region
      $region6: #{reverse.0} parent=4 // pred_check
        _
      $region7: #{reverse.0} parent=4 // pred_check_branch
        %6 = sbr.rel (0) target = $region9
      $region8: #{reverse.0} parent=4 // pred_region
        // Predicated region
        $region21: #{reverse.0} parent=8 // pred_check
          _
        $region22: #{reverse.0} parent=8 // pred_check_branch
          %36 = sbr.rel (0) target = $region24
        $region23: #{reverse.0} parent=8 // pred_region
          loop: start=0, step=1, limit=1
          $region25: #{reverse.0} parent=23 // loop_pre_header
            _
          $region26: #{reverse.0} parent=23 // loop_header
            %s38 = sphi 0, %s42
            %p39 = scmp.ge.s32.totalorder %s38, 1
            %s43 = sphi %s0, %s0
            %s44 = sphi %s2, %s2
          $region27: #{reverse.0} parent=23 // loop_header_branch
            %41 = sbr.rel (%p39) target = $region31
          $region28: #{reverse.0} parent=23 // loop_body
            %v45 = vld [vmem:[%s43] sm:$0xff]
            %46 = vst [vmem:[%s44] sm:$0xff] %v45
            %v47 = vld [vmem:[%s43 + $0x8] sm:$0xff]
            %48 = vst [vmem:[%s44 + $0x10] sm:$0xff] %v47
            %v49 = vld [vmem:[%s43 + $0x10] sm:$0xff]
            %50 = vst [vmem:[%s44 + $0x20] sm:$0xff] %v49
            %v51 = vld [vmem:[%s43 + $0x18] sm:$0xff]
            %52 = vst [vmem:[%s44 + $0x30] sm:$0xff] %v51
            %v53 = vld [vmem:[%s43 + $0x20] sm:$0xff]
            %54 = vst [vmem:[%s44 + $0x40] sm:$0xff] %v53
            %v55 = vld [vmem:[%s43 + $0x28] sm:$0xff]
            %56 = vst [vmem:[%s44 + $0x50] sm:$0xff] %v55
            %v57 = vld [vmem:[%s43 + $0x30] sm:$0xff]
            %58 = vst [vmem:[%s44 + $0x60] sm:$0xff] %v57
            %v59 = vld [vmem:[%s43 + $0x38] sm:$0xff]
            %60 = vst [vmem:[%s44 + $0x70] sm:$0xff] %v59
          $region29: #{reverse.0} parent=23 // loop_footer
            %s42 = sadd.s32 1, %s38
          $region30: #{reverse.0} parent=23 // loop_footer_branch
            %37 = sbr.rel target = $region26
          $region31: #{reverse.0} parent=23 // loop_exit
            _
        $region24: #{reverse.0} parent=8 // pred_fallthru
          _
        // Predicated region
        $region32: #{reverse.0} parent=8 // pred_check
          _
        $region33: #{reverse.0} parent=8 // pred_check_branch
          %62 = sbr.rel target = $region35
        $region34: #{reverse.0} parent=8 // pred_region
          _
        $region35: #{reverse.0} parent=8 // pred_fallthru
          _
      $region9: #{reverse.0} parent=4 // pred_fallthru
        _
      // Predicated region
      $region10: #{reverse.0} parent=4 // pred_check
        _
      $region11: #{reverse.0} parent=4 // pred_check_branch
        %8 = sbr.rel target = $region13
      $region12: #{reverse.0} parent=4 // pred_region
        %s10 = ssub.s32 256, 1
        loop: start=0, step=1, limit=1
        $region14: #{reverse.0} parent=12 // loop_pre_header
          _
        $region15: #{reverse.0} parent=12 // loop_header
          %s12 = sphi 0, %s16
          %p13 = scmp.ge.s32.totalorder %s12, 1
          %s17 = sphi %s0, %s0
          %s18 = sphi %s2, %s2
        $region16: #{reverse.0} parent=12 // loop_header_branch
          %15 = sbr.rel (%p13) target = $region20
        $region17: #{reverse.0} parent=12 // loop_body
          %v19 = vld [vmem:[%s17] sm:%s10]
          %20 = vst [vmem:[%s18] sm:%s10] %v19
          %v21 = vld [vmem:[%s17 + $0x8] sm:%s10]
          %22 = vst [vmem:[%s18 + $0x10] sm:%s10] %v21
          %v23 = vld [vmem:[%s17 + $0x10] sm:%s10]
          %24 = vst [vmem:[%s18 + $0x20] sm:%s10] %v23
          %v25 = vld [vmem:[%s17 + $0x18] sm:%s10]
          %26 = vst [vmem:[%s18 + $0x30] sm:%s10] %v25
          %v27 = vld [vmem:[%s17 + $0x20] sm:%s10]
          %28 = vst [vmem:[%s18 + $0x40] sm:%s10] %v27
          %v29 = vld [vmem:[%s17 + $0x28] sm:%s10]
          %30 = vst [vmem:[%s18 + $0x50] sm:%s10] %v29
          %v31 = vld [vmem:[%s17 + $0x30] sm:%s10]
          %32 = vst [vmem:[%s18 + $0x60] sm:%s10] %v31
          %v33 = vld [vmem:[%s17 + $0x38] sm:%s10]
          %34 = vst [vmem:[%s18 + $0x70] sm:%s10] %v33
        $region18: #{reverse.0} parent=12 // loop_footer
          %s16 = sadd.s32 1, %s12
        $region19: #{reverse.0} parent=12 // loop_footer_branch
          %11 = sbr.rel target = $region15
        $region20: #{reverse.0} parent=12 // loop_exit
          _
      $region13: #{reverse.0} parent=4 // pred_fallthru
        _
    $region5: #{reverse.0} parent=1 // pred_fallthru
      _
    %63 = vnop
    %s64 = scalar_lea.vmem [#allocation0], 7
    %v65 = vld [vmem:[%s64] ss:$-1 sm:$0xff]
    %v66 = vrot.slane %v65, 1
    %67 = vst [vmem:[#allocation1] sm:$0xff] %v66
    %s68 = scalar_lea.vmem [#allocation0], 8
    %s69 = scalar_lea.vmem %s68, 7 [#allocation0]
    %v70 = vld [vmem:[%s69] ss:$-1 sm:$0xff]
    %v71 = vrot.slane %v70, 1
    %v72 = vlaneseq
    %v73 = vshrl.u32 %v72, 7
    %vm74 = vcmp.lt.s32.totalorder %v73, 7
    %75 = vst.msk [vmem:[#allocation1] sm:$0xff] %vm74, %v71
    %s76 = scalar_lea.vmem [#allocation1], 8
    %s77 = scalar_lea.vmem [#allocation0], 16
    %s78 = scalar_lea.vmem %s77, 7 [#allocation0]
    %v79 = vld [vmem:[%s78] ss:$-1 sm:$0xff]
    %v80 = vrot.slane %v79, 1
    %81 = vst [vmem:[%s76] sm:$0xff] %v80
    %s82 = scalar_lea.vmem %s77, 8 [#allocation0]
    %s83 = scalar_lea.vmem %s82, 7 [#allocation0]
    %v84 = vld [vmem:[%s83] ss:$-1 sm:$0xff]
    %v85 = vrot.slane %v84, 1
    %v86 = vlaneseq
    %v87 = vshrl.u32 %v86, 7
    %vm88 = vcmp.lt.s32.totalorder %v87, 7
    %89 = vst.msk [vmem:[%s76] sm:$0xff] %vm88, %v85
    %s90 = scalar_lea.vmem [#allocation1], 16
    %s91 = scalar_lea.vmem [#allocation0], 32
    %s92 = scalar_lea.vmem %s91, 7 [#allocation0]
    %v93 = vld [vmem:[%s92] ss:$-1 sm:$0xff]
    %v94 = vrot.slane %v93, 1
    %95 = vst [vmem:[%s90] sm:$0xff] %v94
    %s96 = scalar_lea.vmem %s91, 8 [#allocation0]
    %s97 = scalar_lea.vmem %s96, 7 [#allocation0]
    %v98 = vld [vmem:[%s97] ss:$-1 sm:$0xff]
    %v99 = vrot.slane %v98, 1
    %v100 = vlaneseq
    %v101 = vshrl.u32 %v100, 7
    %vm102 = vcmp.lt.s32.totalorder %v101, 7
    %103 = vst.msk [vmem:[%s90] sm:$0xff] %vm102, %v99
    %s104 = scalar_lea.vmem [#allocation1], 24
    %s105 = scalar_lea.vmem [#allocation0], 48
    %s106 = scalar_lea.vmem %s105, 7 [#allocation0]
    %v107 = vld [vmem:[%s106] ss:$-1 sm:$0xff]
    %v108 = vrot.slane %v107, 1
    %109 = vst [vmem:[%s104] sm:$0xff] %v108
    %s110 = scalar_lea.vmem %s105, 8 [#allocation0]
    %s111 = scalar_lea.vmem %s110, 7 [#allocation0]
    %v112 = vld [vmem:[%s111] ss:$-1 sm:$0xff]
    %v113 = vrot.slane %v112, 1
    %v114 = vlaneseq
    %v115 = vshrl.u32 %v114, 7
    %vm116 = vcmp.lt.s32.totalorder %v115, 7
    %117 = vst.msk [vmem:[%s104] sm:$0xff] %vm116, %v113
    %s118 = scalar_lea.vmem [#allocation1], 32
    %s119 = scalar_lea.vmem [#allocation0], 64
    %s120 = scalar_lea.vmem %s119, 7 [#allocation0]
    %v121 = vld [vmem:[%s120] ss:$-1 sm:$0xff]
    %v122 = vrot.slane %v121, 1
    %123 = vst [vmem:[%s118] sm:$0xff] %v122
    %s124 = scalar_lea.vmem %s119, 8 [#allocation0]
    %s125 = scalar_lea.vmem %s124, 7 [#allocation0]
    %v126 = vld [vmem:[%s125] ss:$-1 sm:$0xff]
    %v127 = vrot.slane %v126, 1
    %v128 = vlaneseq
    %v129 = vshrl.u32 %v128, 7
    %vm130 = vcmp.lt.s32.totalorder %v129, 7
    %131 = vst.msk [vmem:[%s118] sm:$0xff] %vm130, %v127
    %s132 = scalar_lea.vmem [#allocation1], 40
    %s133 = scalar_lea.vmem [#allocation0], 80
    %s134 = scalar_lea.vmem %s133, 7 [#allocation0]
    %v135 = vld [vmem:[%s134] ss:$-1 sm:$0xff]
    %v136 = vrot.slane %v135, 1
    %137 = vst [vmem:[%s132] sm:$0xff] %v136
    %s138 = scalar_lea.vmem %s133, 8 [#allocation0]
    %s139 = scalar_lea.vmem %s138, 7 [#allocation0]
    %v140 = vld [vmem:[%s139] ss:$-1 sm:$0xff]
    %v141 = vrot.slane %v140, 1
    %v142 = vlaneseq
    %v143 = vshrl.u32 %v142, 7
    %vm144 = vcmp.lt.s32.totalorder %v143, 7
    %145 = vst.msk [vmem:[%s132] sm:$0xff] %vm144, %v141
    %s146 = scalar_lea.vmem [#allocation1], 48
    %s147 = scalar_lea.vmem [#allocation0], 96
    %s148 = scalar_lea.vmem %s147, 7 [#allocation0]
    %v149 = vld [vmem:[%s148] ss:$-1 sm:$0xff]
    %v150 = vrot.slane %v149, 1
    %151 = vst [vmem:[%s146] sm:$0xff] %v150
    %s152 = scalar_lea.vmem %s147, 8 [#allocation0]
    %s153 = scalar_lea.vmem %s152, 7 [#allocation0]
    %v154 = vld [vmem:[%s153] ss:$-1 sm:$0xff]
    %v155 = vrot.slane %v154, 1
    %v156 = vlaneseq
    %v157 = vshrl.u32 %v156, 7
    %vm158 = vcmp.lt.s32.totalorder %v157, 7
    %159 = vst.msk [vmem:[%s146] sm:$0xff] %vm158, %v155
    %s160 = scalar_lea.vmem [#allocation1], 56
    %s161 = scalar_lea.vmem [#allocation0], 112
    %s162 = scalar_lea.vmem %s161, 7 [#allocation0]
    %v163 = vld [vmem:[%s162] ss:$-1 sm:$0xff]
    %v164 = vrot.slane %v163, 1
    %165 = vst [vmem:[%s160] sm:$0xff] %v164
    %s166 = scalar_lea.vmem %s161, 8 [#allocation0]
    %s167 = scalar_lea.vmem %s166, 7 [#allocation0]
    %v168 = vld [vmem:[%s167] ss:$-1 sm:$0xff]
    %v169 = vrot.slane %v168, 1
    %v170 = vlaneseq
    %v171 = vshrl.u32 %v170, 7
    %vm172 = vcmp.lt.s32.totalorder %v171, 7
    %173 = vst.msk [vmem:[%s160] sm:$0xff] %vm172, %v169
    // Predicated region
    $region36: #{reverse.0} parent=1 // pred_check
      _
    $region37: #{reverse.0} parent=1 // pred_check_branch
      %175 = sbr.rel (0) target = $region39
    $region38: #{reverse.0} parent=1 // pred_region
      // Predicated region
      $region40: #{reverse.0} parent=38 // pred_check
        _
      $region41: #{reverse.0} parent=38 // pred_check_branch
        %177 = sbr.rel (0) target = $region43
      $region42: #{reverse.0} parent=38 // pred_region
        // Predicated region
        $region55: #{reverse.0} parent=42 // pred_check
          _
        $region56: #{reverse.0} parent=42 // pred_check_branch
          %207 = sbr.rel (0) target = $region58
        $region57: #{reverse.0} parent=42 // pred_region
          loop: start=0, step=1, limit=1
          $region59: #{reverse.0} parent=57 // loop_pre_header
            _
          $region60: #{reverse.0} parent=57 // loop_header
            %s209 = sphi 0, %s213
            %p210 = scmp.ge.s32.totalorder %s209, 1
            %s214 = sphi [#allocation1], [#allocation1]
            %s215 = sphi %s1, %s1
          $region61: #{reverse.0} parent=57 // loop_header_branch
            %212 = sbr.rel (%p210) target = $region65
          $region62: #{reverse.0} parent=57 // loop_body
            %v216 = vld [vmem:[%s214] sm:$0xff]
            %217 = vst [vmem:[%s215] sm:$0xff] %v216
            %v218 = vld [vmem:[%s214 + $0x8] sm:$0xff]
            %219 = vst [vmem:[%s215 + $0x8] sm:$0xff] %v218
            %v220 = vld [vmem:[%s214 + $0x10] sm:$0xff]
            %221 = vst [vmem:[%s215 + $0x10] sm:$0xff] %v220
            %v222 = vld [vmem:[%s214 + $0x18] sm:$0xff]
            %223 = vst [vmem:[%s215 + $0x18] sm:$0xff] %v222
            %v224 = vld [vmem:[%s214 + $0x20] sm:$0xff]
            %225 = vst [vmem:[%s215 + $0x20] sm:$0xff] %v224
            %v226 = vld [vmem:[%s214 + $0x28] sm:$0xff]
            %227 = vst [vmem:[%s215 + $0x28] sm:$0xff] %v226
            %v228 = vld [vmem:[%s214 + $0x30] sm:$0xff]
            %229 = vst [vmem:[%s215 + $0x30] sm:$0xff] %v228
            %v230 = vld [vmem:[%s214 + $0x38] sm:$0xff]
            %231 = vst [vmem:[%s215 + $0x38] sm:$0xff] %v230
          $region63: #{reverse.0} parent=57 // loop_footer
            %s213 = sadd.s32 1, %s209
          $region64: #{reverse.0} parent=57 // loop_footer_branch
            %208 = sbr.rel target = $region60
          $region65: #{reverse.0} parent=57 // loop_exit
            _
        $region58: #{reverse.0} parent=42 // pred_fallthru
          _
        // Predicated region
        $region66: #{reverse.0} parent=42 // pred_check
          _
        $region67: #{reverse.0} parent=42 // pred_check_branch
          %233 = sbr.rel target = $region69
        $region68: #{reverse.0} parent=42 // pred_region
          _
        $region69: #{reverse.0} parent=42 // pred_fallthru
          _
      $region43: #{reverse.0} parent=38 // pred_fallthru
        _
      // Predicated region
      $region44: #{reverse.0} parent=38 // pred_check
        _
      $region45: #{reverse.0} parent=38 // pred_check_branch
        %179 = sbr.rel target = $region47
      $region46: #{reverse.0} parent=38 // pred_region
        %s181 = ssub.s32 256, 1
        loop: start=0, step=1, limit=1
        $region48: #{reverse.0} parent=46 // loop_pre_header
          _
        $region49: #{reverse.0} parent=46 // loop_header
          %s183 = sphi 0, %s187
          %p184 = scmp.ge.s32.totalorder %s183, 1
          %s188 = sphi [#allocation1], [#allocation1]
          %s189 = sphi %s1, %s1
        $region50: #{reverse.0} parent=46 // loop_header_branch
          %186 = sbr.rel (%p184) target = $region54
        $region51: #{reverse.0} parent=46 // loop_body
          %v190 = vld [vmem:[%s188] sm:%s181]
          %191 = vst [vmem:[%s189] sm:%s181] %v190
          %v192 = vld [vmem:[%s188 + $0x8] sm:%s181]
          %193 = vst [vmem:[%s189 + $0x8] sm:%s181] %v192
          %v194 = vld [vmem:[%s188 + $0x10] sm:%s181]
          %195 = vst [vmem:[%s189 + $0x10] sm:%s181] %v194
          %v196 = vld [vmem:[%s188 + $0x18] sm:%s181]
          %197 = vst [vmem:[%s189 + $0x18] sm:%s181] %v196
          %v198 = vld [vmem:[%s188 + $0x20] sm:%s181]
          %199 = vst [vmem:[%s189 + $0x20] sm:%s181] %v198
          %v200 = vld [vmem:[%s188 + $0x28] sm:%s181]
          %201 = vst [vmem:[%s189 + $0x28] sm:%s181] %v200
          %v202 = vld [vmem:[%s188 + $0x30] sm:%s181]
          %203 = vst [vmem:[%s189 + $0x30] sm:%s181] %v202
          %v204 = vld [vmem:[%s188 + $0x38] sm:%s181]
          %205 = vst [vmem:[%s189 + $0x38] sm:%s181] %v204
        $region52: #{reverse.0} parent=46 // loop_footer
          %s187 = sadd.s32 1, %s183
        $region53: #{reverse.0} parent=46 // loop_footer_branch
          %182 = sbr.rel target = $region49
        $region54: #{reverse.0} parent=46 // loop_exit
          _
      $region47: #{reverse.0} parent=38 // pred_fallthru
        _
    $region39: #{reverse.0} parent=1 // pred_fallthru
      _
    %234 = vnop

// kernel: spatial_frequency_block.2
$region0: #{spatial_frequency_block.2}
  #allocation0 [shape = 'u32[]', space=smem, size = 0x4, offset = 0x4, fixed_abs, tag = 'smem constant byte address 0x4 - core index']
  #allocation1 [shape = 'u32[144,128]{1,0:T(1,128)}', space=vmem, size = 0x12000, scoped, tag = 'internal scratch']
  %s0 = inlined_call_operand.vmem [shape: f32[1,8,144], index: 0, kind: input, shape index: {}]
  %s1 = inlined_call_operand.vmem [shape: f32[8,8], index: 1, kind: input, shape index: {}]
  %s2 = inlined_call_operand.vmem [shape: f32[8,1], index: 2, kind: input, shape index: {}]
  %s3 = inlined_call_operand.vmem [shape: f32[8,8], index: 3, kind: input, shape index: {}]
  %s4 = inlined_call_operand.vmem [shape: f32[8,1], index: 4, kind: input, shape index: {}]
  %s5 = inlined_call_operand.vmem [shape: f32[1,8,144], index: 5, kind: output, shape index: {}]
  %s6 = sld [smem:[#allocation0]]
  $region53: #{spatial_frequency_block.2} parent=0
    _
  %s8 = ssub.s32 1, %s6
  %s9 = scalar_select 0, %s8, %s6
  loop: start=0, step=1, limit=4
  $region2: #{spatial_frequency_block.2} parent=0 // loop_pre_header
    _
  $region3: #{spatial_frequency_block.2} parent=0 // loop_header
    %s11 = sphi 0, %s15
    %p12 = scmp.ge.s32.totalorder %s11, 4
    %s18 = sphi 0, %s30
    %s19 = sphi 0, %s26
    %s20 = sphi 0, %s18
    %s21 = sphi 0, %s19
    %s22 = sphi 0, %s20
    %s23 = sphi 0, %s21
    %s35 = sphi 0, %s37
    %s38 = sphi 0, %s35
    %s39 = sphi 0, %s38
    %s55 = sphi 0, %s39
    %s59 = sphi 0, %s59
    %s61 = sphi 0, %s59
    %s62 = sphi 0, %s61
    %s76 = sphi 0, %s62
    %s80 = sphi 0, %s80
    %s82 = sphi 0, %s80
    %s83 = sphi 0, %s82
    %s97 = sphi 0, %s83
    %s101 = sphi 0, %s101
    %s103 = sphi 0, %s101
    %s104 = sphi 0, %s103
    %s118 = sphi 0, %s104
    %s122 = sphi 0, %s122
    %s124 = sphi 0, %s122
    %s125 = sphi 0, %s124
    %s139 = sphi 0, %s125
    %s147 = sphi 0, %s149
    %s150 = sphi 0, %s147
    %s151 = sphi 0, %s150
    %s167 = sphi 0, %s151
  $region4: #{spatial_frequency_block.2} parent=0 // loop_header_branch
    %14 = sbr.rel (%p12) target = $region8
  $region5: #{spatial_frequency_block.2} parent=0 // loop_body
    %s16 = ssub.s32 %s11, 1
    %s17 = ssub.s32 %s11, 2
    %s24 = sadd.s32 1, %s19
    %p25 = scmp.ge.s32.totalorder %s24, 2
    %s26 = scalar_select %p25, 0, %s24
    %s27 = sadd.s32 1, %s18
    %s28 = scalar_select %p25, %s27, %s18
    %p29 = scmp.ge.s32.totalorder %s28, 1
    %s30 = scalar_select %p29, 0, %s28
    %s31 = ssub.s32 %s18, %s30
    %s32 = ssub.s32 %s19, %s26
    %s33 = sor.u32 %s31, %s32
    %p34 = scmp.eq.s32.totalorder %s33, 0
    %s36 = sadd.s32 %s35, 1
    %s37 = scalar_select %p34, %s35, %s36
    %p40 = pneg %p34
    %p41 = scmp.eq.s32.totalorder %s11, 1
    %p42 = por %p40, %p41
    %p43 = scmp.ne.s32.totalorder %s35, %s38
    %p44 = scmp.eq.s32.totalorder %s11, 0
    %p45 = por %p43, %p44
    %p46 = scmp.ne.s32.totalorder %s35, %s38
    %p47 = scmp.eq.s32.totalorder %s16, 1
    %p48 = por %p46, %p47
    %p49 = scmp.ne.s32.totalorder %s38, %s39
    %p50 = scmp.eq.s32.totalorder %s16, 0
    %p51 = por %p49, %p50
    %p52 = scmp.ne.s32.totalorder %s38, %s39
    %p53 = scmp.eq.s32.totalorder %s17, 1
    %p54 = por %p52, %p53
    %p56 = scmp.ne.s32.totalorder %s39, %s55
    %p57 = scmp.eq.s32.totalorder %s17, 0
    %p58 = por %p56, %p57
    %s60 = sadd.s32 %s59, 1
    %p63 = scmp.eq.s32.totalorder %s11, 1
    %p64 = scmp.ne.s32.totalorder %s59, %s61
    %p65 = scmp.eq.s32.totalorder %s11, 0
    %p66 = por %p64, %p65
    %p67 = scmp.ne.s32.totalorder %s59, %s61
    %p68 = scmp.eq.s32.totalorder %s16, 1
    %p69 = por %p67, %p68
    %p70 = scmp.ne.s32.totalorder %s61, %s62
    %p71 = scmp.eq.s32.totalorder %s16, 0
    %p72 = por %p70, %p71
    %p73 = scmp.ne.s32.totalorder %s61, %s62
    %p74 = scmp.eq.s32.totalorder %s17, 1
    %p75 = por %p73, %p74
    %p77 = scmp.ne.s32.totalorder %s62, %s76
    %p78 = scmp.eq.s32.totalorder %s17, 0
    %p79 = por %p77, %p78
    %s81 = sadd.s32 %s80, 1
    %p84 = scmp.eq.s32.totalorder %s11, 1
    %p85 = scmp.ne.s32.totalorder %s80, %s82
    %p86 = scmp.eq.s32.totalorder %s11, 0
    %p87 = por %p85, %p86
    %p88 = scmp.ne.s32.totalorder %s80, %s82
    %p89 = scmp.eq.s32.totalorder %s16, 1
    %p90 = por %p88, %p89
    %p91 = scmp.ne.s32.totalorder %s82, %s83
    %p92 = scmp.eq.s32.totalorder %s16, 0
    %p93 = por %p91, %p92
    %p94 = scmp.ne.s32.totalorder %s82, %s83
    %p95 = scmp.eq.s32.totalorder %s17, 1
    %p96 = por %p94, %p95
    %p98 = scmp.ne.s32.totalorder %s83, %s97
    %p99 = scmp.eq.s32.totalorder %s17, 0
    %p100 = por %p98, %p99
    %s102 = sadd.s32 %s101, 1
    %p105 = scmp.eq.s32.totalorder %s11, 1
    %p106 = scmp.ne.s32.totalorder %s101, %s103
    %p107 = scmp.eq.s32.totalorder %s11, 0
    %p108 = por %p106, %p107
    %p109 = scmp.ne.s32.totalorder %s101, %s103
    %p110 = scmp.eq.s32.totalorder %s16, 1
    %p111 = por %p109, %p110
    %p112 = scmp.ne.s32.totalorder %s103, %s104
    %p113 = scmp.eq.s32.totalorder %s16, 0
    %p114 = por %p112, %p113
    %p115 = scmp.ne.s32.totalorder %s103, %s104
    %p116 = scmp.eq.s32.totalorder %s17, 1
    %p117 = por %p115, %p116
    %p119 = scmp.ne.s32.totalorder %s104, %s118
    %p120 = scmp.eq.s32.totalorder %s17, 0
    %p121 = por %p119, %p120
    %s123 = sadd.s32 %s122, 1
    %p126 = scmp.eq.s32.totalorder %s11, 1
    %p127 = scmp.ne.s32.totalorder %s122, %s124
    %p128 = scmp.eq.s32.totalorder %s11, 0
    %p129 = por %p127, %p128
    %p130 = scmp.ne.s32.totalorder %s122, %s124
    %p131 = scmp.eq.s32.totalorder %s16, 1
    %p132 = por %p130, %p131
    %p133 = scmp.ne.s32.totalorder %s124, %s125
    %p134 = scmp.eq.s32.totalorder %s16, 0
    %p135 = por %p133, %p134
    %p136 = scmp.ne.s32.totalorder %s124, %s125
    %p137 = scmp.eq.s32.totalorder %s17, 1
    %p138 = por %p136, %p137
    %p140 = scmp.ne.s32.totalorder %s125, %s139
    %p141 = scmp.eq.s32.totalorder %s17, 0
    %p142 = por %p140, %p141
    %s143 = ssub.s32 %s18, %s30
    %s144 = ssub.s32 %s19, %s26
    %s145 = sor.u32 %s143, %s144
    %p146 = scmp.eq.s32.totalorder %s145, 0
    %s148 = sadd.s32 %s147, 1
    %s149 = scalar_select %p146, %s147, %s148
    %p152 = pneg %p146
    %p153 = scmp.eq.s32.totalorder %s11, 1
    %p154 = por %p152, %p153
    %p155 = scmp.ne.s32.totalorder %s147, %s150
    %p156 = scmp.eq.s32.totalorder %s11, 0
    %p157 = por %p155, %p156
    %p158 = scmp.ne.s32.totalorder %s147, %s150
    %p159 = scmp.eq.s32.totalorder %s16, 1
    %p160 = por %p158, %p159
    %p161 = scmp.ne.s32.totalorder %s150, %s151
    %p162 = scmp.eq.s32.totalorder %s16, 0
    %p163 = por %p161, %p162
    %p164 = scmp.ne.s32.totalorder %s150, %s151
    %p165 = scmp.eq.s32.totalorder %s17, 1
    %p166 = por %p164, %p165
    %p168 = scmp.ne.s32.totalorder %s151, %s167
    %p169 = scmp.eq.s32.totalorder %s17, 0
    %p170 = por %p168, %p169
    %p171 = scmp.le.s32.totalorder 1, %s11
    %p172 = scmp.lt.s32.totalorder %s11, 3
    %p173 = pnand %p171, %p172
    %p174 = pneg %p173
    // Predicated region
    $region9: #{spatial_frequency_block.2} parent=5 // pred_check
      _
    $region10: #{spatial_frequency_block.2} parent=5 // pred_check_branch
      %176 = sbr.rel (%p173) target = $region12
    $region11: #{spatial_frequency_block.2} parent=5 // pred_region
      %s177 = ssub.s32 %s11, 1
      // Predicated region
      $region13: #{spatial_frequency_block.2} parent=11 // pred_check
        %p178 = pneg %p72
      $region14: #{spatial_frequency_block.2} parent=11 // pred_check_branch
        %180 = sbr.rel (%p178) target = $region16
      $region15: #{spatial_frequency_block.2} parent=11 // pred_region
        _
      $region16: #{spatial_frequency_block.2} parent=11 // pred_fallthru
        _
      // Predicated region
      $region17: #{spatial_frequency_block.2} parent=11 // pred_check
        %p181 = pneg %p93
      $region18: #{spatial_frequency_block.2} parent=11 // pred_check_branch
        %183 = sbr.rel (%p181) target = $region20
      $region19: #{spatial_frequency_block.2} parent=11 // pred_region
        _
      $region20: #{spatial_frequency_block.2} parent=11 // pred_fallthru
        _
      // Predicated region
      $region21: #{spatial_frequency_block.2} parent=11 // pred_check
        %p184 = pneg %p114
      $region22: #{spatial_frequency_block.2} parent=11 // pred_check_branch
        %186 = sbr.rel (%p184) target = $region24
      $region23: #{spatial_frequency_block.2} parent=11 // pred_region
        _
      $region24: #{spatial_frequency_block.2} parent=11 // pred_fallthru
        _
      // Predicated region
      $region25: #{spatial_frequency_block.2} parent=11 // pred_check
        %p187 = pneg %p135
      $region26: #{spatial_frequency_block.2} parent=11 // pred_check_branch
        %189 = sbr.rel (%p187) target = $region28
      $region27: #{spatial_frequency_block.2} parent=11 // pred_region
        _
      $region28: #{spatial_frequency_block.2} parent=11 // pred_fallthru
        _
    $region12: #{spatial_frequency_block.2} parent=5 // pred_fallthru
      _
    %p190 = scmp.lt.s32.totalorder %s11, 2
    // Predicated region
    $region29: #{spatial_frequency_block.2} parent=5 // pred_check
      %p191 = pneg %p190
    $region30: #{spatial_frequency_block.2} parent=5 // pred_check_branch
      %193 = sbr.rel (%p191) target = $region32
    $region31: #{spatial_frequency_block.2} parent=5 // pred_region
      // Predicated region
      $region33: #{spatial_frequency_block.2} parent=31 // pred_check
        %p194 = pneg %p45
      $region34: #{spatial_frequency_block.2} parent=31 // pred_check_branch
        %196 = sbr.rel (%p194) target = $region36
      $region35: #{spatial_frequency_block.2} parent=31 // pred_region
        %p197 = scmp.lt.s32.totalorder %s18, 0
        %s198 = scalar_select %p197, %s18, 0
        %p199 = scmp.lt.s32.totalorder %s19, 1
        %s200 = scalar_select %p199, %s19, 1
        %s201 = smul.addr %s198, 2
        %s202 = sadd.s32 %s200, %s201
        %s203 = smul.addr %s202, 8
        %s204 = scalar_lea.vmem %s0, %s203
      $region36: #{spatial_frequency_block.2} parent=31 // pred_fallthru
        _
    $region32: #{spatial_frequency_block.2} parent=5 // pred_fallthru
      _
    %p205 = scmp.le.s32.totalorder 1, %s11
    %p206 = scmp.lt.s32.totalorder %s11, 3
    %p207 = pnand %p205, %p206
    %p208 = pneg %p207
    // Predicated region
    $region37: #{spatial_frequency_block.2} parent=5 // pred_check
      _
    $region38: #{spatial_frequency_block.2} parent=5 // pred_check_branch
      %210 = sbr.rel (%p207) target = $region40
    $region39: #{spatial_frequency_block.2} parent=5 // pred_region
      %s211 = ssub.s32 %s11, 1
      %p212 = scmp.lt.s32.totalorder %s20, 0
      %s213 = scalar_select %p212, %s20, 0
      %p214 = scmp.lt.s32.totalorder %s21, 1
      %s215 = scalar_select %p214, %s21, 1
      %s216 = smul.addr %s213, 2
      %s217 = sadd.s32 %s215, %s216
      %s218 = smul.addr %s217, 8
      %s219 = scalar_lea.vmem %s0, %s218
      %p220 = pneg %p51
      %p221 = pneg %p48
      %p222 = pneg %p72
      %p223 = pneg %p69
      %p224 = pneg %p93
      %p225 = pneg %p90
      %p226 = pneg %p114
      %p227 = pneg %p111
      %p228 = pneg %p135
      %p229 = pneg %p132
      %p230 = pneg %p163
      %p231 = pneg %p160
      %p232 = scmp.lt.s32.totalorder %s20, 0
      %s233 = scalar_select %p232, %s20, 0
      %p234 = scmp.lt.s32.totalorder %s21, 1
      %s235 = scalar_select %p234, %s21, 1
      %s236 = smul.addr %s233, 2
      %s237 = sadd.s32 %s235, %s236
      %s238 = smul.addr %s237, 8
      %s239 = scalar_lea.vmem %s5, %s238
      %p240 = scmp.lt.s32.totalorder %s20, 0
      %s241 = scalar_select %p240, %s20, 0
      %p242 = scmp.lt.s32.totalorder %s21, 1
      %s243 = scalar_select %p242, %s21, 1
      %s244 = smul.addr %s241, 2
      %s245 = sadd.s32 %s243, %s244
      %s246 = smul.addr %s245, 8
      %s247 = scalar_lea.vmem %s0, %s246
      %p248 = scmp.lt.s32.totalorder %s20, 0
      %s249 = scalar_select %p248, %s20, 0
      %p250 = scmp.lt.s32.totalorder %s21, 1
      %s251 = scalar_select %p250, %s21, 1
      %s252 = smul.addr %s249, 2
      %s253 = sadd.s32 %s251, %s252
      %s254 = smul.addr %s253, 8
      %s255 = scalar_lea.vmem %s5, %s254
      %v256 = vld [vmem:[%s247] sm:$0xff]
      %v257 = vld [vmem:[%s1] sm:$0xff]
      %v258 = vld [vmem:[%s2] sm:$0xff]
      %260 = vset.pattern.permute.xlu0 0
      %261 = vperm.xlu0 %260, %v258
      %v262 = vpop.permute.xlu0 %261
      %vm264 = vcmask 64512
      %v266 = vsel %vm264, %v257, 0
      %268 = vmatprep.subr.mxu0 0.0
      %269 = vmatpush1.msra.mxu0 0.0
      %270 = vmatprep.subr.mxu0 0.0
      %271 = vmatpush1.msra.mxu0 0.0
      %272 = vmatprep.subr.mxu0 0.0
      %273 = vmatpush1.msra.mxu0 0.0
      %274 = vmatprep.subr.mxu0 0.0
      %275 = vmatpush1.msra.mxu0 0.0
      %276 = vmatprep.subr.mxu0 0.0
      %277 = vmatpush1.msra.mxu0 0.0
      %278 = vmatprep.subr.mxu0 0.0
      %279 = vmatpush1.msra.mxu0 0.0
      %280 = vmatprep.subr.mxu0 0.0
      %281 = vmatpush1.msra.mxu0 0.0
      %282 = vmatprep.subr.mxu0 0.0
      %283 = vmatpush1.msra.mxu0 0.0
      %284 = vmatprep.subr.mxu0 0.0
      %285 = vmatpush1.msra.mxu0 0.0
      %286 = vmatprep.subr.mxu0 0.0
      %287 = vmatpush1.msra.mxu0 0.0
      %288 = vmatprep.subr.mxu0 0.0
      %289 = vmatpush1.msra.mxu0 0.0
      %290 = vmatprep.subr.mxu0 0.0
      %291 = vmatpush1.msra.mxu0 0.0
      %292 = vmatprep.subr.mxu0 0.0
      %293 = vmatpush1.msra.mxu0 0.0
      %294 = vmatprep.subr.mxu0 0.0
      %295 = vmatpush1.msra.mxu0 0.0
      %296 = vmatprep.subr.mxu0 0.0
      %297 = vmatpush1.msra.mxu0 0.0
      %298 = vmatprep.subr.mxu0 0.0
      %299 = vmatpush1.msra.mxu0 %v256
      %300 = vmatprep.subr.mxu0 0.0
      %301 = vmatpush2.msra.mxu0 0.0
      %302 = vmatprep.subr.mxu0 0.0
      %303 = vmatpush2.msra.mxu0 0.0
      %304 = vmatprep.subr.mxu0 0.0
      %305 = vmatpush2.msra.mxu0 0.0
      %306 = vmatprep.subr.mxu0 0.0
      %307 = vmatpush2.msra.mxu0 0.0
      %308 = vmatprep.subr.mxu0 0.0
      %309 = vmatpush2.msra.mxu0 0.0
      %310 = vmatprep.subr.mxu0 0.0
      %311 = vmatpush2.msra.mxu0 0.0
      %312 = vmatprep.subr.mxu0 0.0
      %313 = vmatpush2.msra.mxu0 0.0
      %314 = vmatprep.subr.mxu0 0.0
      %315 = vmatpush2.msra.mxu0 0.0
      %316 = vmatprep.subr.mxu0 0.0
      %317 = vmatpush2.msra.mxu0 0.0
      %318 = vmatprep.subr.mxu0 0.0
      %319 = vmatpush2.msra.mxu0 0.0
      %320 = vmatprep.subr.mxu0 0.0
      %321 = vmatpush2.msra.mxu0 0.0
      %322 = vmatprep.subr.mxu0 0.0
      %323 = vmatpush2.msra.mxu0 0.0
      %324 = vmatprep.subr.mxu0 0.0
      %325 = vmatpush2.msra.mxu0 0.0
      %326 = vmatprep.subr.mxu0 0.0
      %327 = vmatpush2.msra.mxu0 0.0
      %328 = vmatprep.subr.mxu0 0.0
      %329 = vmatpush2.msra.mxu0 0.0
      %330 = vmatprep.subr.mxu0 0.0
      %331 = vmatpush2.msra.mxu0 0.0
      %332 = vmatprep.mubr.f32.mxu0 0.0
      %333 = vmatmul.mubr.f32.gmra.mxu0 %v266
      %v334 = vpop.f32.mrf.mxu0
      %v335 = vadd.f32 %v262, %v334
      %v336 = vpop.f32.mrf.mxu0
      %337 = vdwg.mxu0
      %v338 = vmax.f32 %v335, 0.0
      %v339 = vld [vmem:[%s3] sm:$0xff]
      %v340 = vld [vmem:[%s4] sm:$0xff]
      %342 = vset.pattern.permute.xlu0 0
      %343 = vperm.xlu0 %342, %v340
      %v344 = vpop.permute.xlu0 %343
      %v347 = vsel %vm264, %v339, 0
      %349 = vmatprep.subr.mxu0 0.0
      %350 = vmatpush1.msra.mxu0 0.0
      %351 = vmatprep.subr.mxu0 0.0
      %352 = vmatpush1.msra.mxu0 0.0
      %353 = vmatprep.subr.mxu0 0.0
      %354 = vmatpush1.msra.mxu0 0.0
      %355 = vmatprep.subr.mxu0 0.0
      %356 = vmatpush1.msra.mxu0 0.0
      %357 = vmatprep.subr.mxu0 0.0
      %358 = vmatpush1.msra.mxu0 0.0
      %359 = vmatprep.subr.mxu0 0.0
      %360 = vmatpush1.msra.mxu0 0.0
      %361 = vmatprep.subr.mxu0 0.0
      %362 = vmatpush1.msra.mxu0 0.0
      %363 = vmatprep.subr.mxu0 0.0
      %364 = vmatpush1.msra.mxu0 0.0
      %365 = vmatprep.subr.mxu0 0.0
      %366 = vmatpush1.msra.mxu0 0.0
      %367 = vmatprep.subr.mxu0 0.0
      %368 = vmatpush1.msra.mxu0 0.0
      %369 = vmatprep.subr.mxu0 0.0
      %370 = vmatpush1.msra.mxu0 0.0
      %371 = vmatprep.subr.mxu0 0.0
      %372 = vmatpush1.msra.mxu0 0.0
      %373 = vmatprep.subr.mxu0 0.0
      %374 = vmatpush1.msra.mxu0 0.0
      %375 = vmatprep.subr.mxu0 0.0
      %376 = vmatpush1.msra.mxu0 0.0
      %377 = vmatprep.subr.mxu0 0.0
      %378 = vmatpush1.msra.mxu0 0.0
      %379 = vmatprep.subr.mxu0 0.0
      %380 = vmatpush1.msra.mxu0 %v338
      %381 = vmatprep.subr.mxu0 0.0
      %382 = vmatpush2.msra.mxu0 0.0
      %383 = vmatprep.subr.mxu0 0.0
      %384 = vmatpush2.msra.mxu0 0.0
      %385 = vmatprep.subr.mxu0 0.0
      %386 = vmatpush2.msra.mxu0 0.0
      %387 = vmatprep.subr.mxu0 0.0
      %388 = vmatpush2.msra.mxu0 0.0
      %389 = vmatprep.subr.mxu0 0.0
      %390 = vmatpush2.msra.mxu0 0.0
      %391 = vmatprep.subr.mxu0 0.0
      %392 = vmatpush2.msra.mxu0 0.0
      %393 = vmatprep.subr.mxu0 0.0
      %394 = vmatpush2.msra.mxu0 0.0
      %395 = vmatprep.subr.mxu0 0.0
      %396 = vmatpush2.msra.mxu0 0.0
      %397 = vmatprep.subr.mxu0 0.0
      %398 = vmatpush2.msra.mxu0 0.0
      %399 = vmatprep.subr.mxu0 0.0
      %400 = vmatpush2.msra.mxu0 0.0
      %401 = vmatprep.subr.mxu0 0.0
      %402 = vmatpush2.msra.mxu0 0.0
      %403 = vmatprep.subr.mxu0 0.0
      %404 = vmatpush2.msra.mxu0 0.0
      %405 = vmatprep.subr.mxu0 0.0
      %406 = vmatpush2.msra.mxu0 0.0
      %407 = vmatprep.subr.mxu0 0.0
      %408 = vmatpush2.msra.mxu0 0.0
      %409 = vmatprep.subr.mxu0 0.0
      %410 = vmatpush2.msra.mxu0 0.0
      %411 = vmatprep.subr.mxu0 0.0
      %412 = vmatpush2.msra.mxu0 0.0
      %413 = vmatprep.mubr.f32.mxu0 0.0
      %414 = vmatmul.mubr.f32.gmra.mxu0 %v347
      %v415 = vpop.f32.mrf.mxu0
      %v416 = vadd.f32 %v344, %v415
      %v417 = vpop.f32.mrf.mxu0
      %418 = vdwg.mxu0
      %v419 = vmax.f32 %v416, 0.0
      %420 = vst [vmem:[%s255] sm:$0xff] %v419
      %p421 = scmp.lt.s32.totalorder %s20, 0
      %s422 = scalar_select %p421, %s20, 0
      %p423 = scmp.lt.s32.totalorder %s21, 1
      %s424 = scalar_select %p423, %s21, 1
      %s425 = smul.addr %s422, 2
      %s426 = sadd.s32 %s424, %s425
      %s427 = smul.addr %s426, 8
      %s428 = scalar_lea.vmem %s5, %s427
      // Predicated region
      $region41: #{spatial_frequency_block.2} parent=39 // pred_check
        %p429 = pneg %p160
      $region42: #{spatial_frequency_block.2} parent=39 // pred_check_branch
        %431 = sbr.rel (%p429) target = $region44
      $region43: #{spatial_frequency_block.2} parent=39 // pred_region
        _
      $region44: #{spatial_frequency_block.2} parent=39 // pred_fallthru
        _
    $region40: #{spatial_frequency_block.2} parent=5 // pred_fallthru
      _
    %p432 = scmp.le.s32.totalorder 2, %s11
    // Predicated region
    $region45: #{spatial_frequency_block.2} parent=5 // pred_check
      %p433 = pneg %p432
    $region46: #{spatial_frequency_block.2} parent=5 // pred_check_branch
      %435 = sbr.rel (%p433) target = $region48
    $region47: #{spatial_frequency_block.2} parent=5 // pred_region
      %s436 = ssub.s32 %s11, 2
      // Predicated region
      $region49: #{spatial_frequency_block.2} parent=47 // pred_check
        %p437 = pneg %p166
      $region50: #{spatial_frequency_block.2} parent=47 // pred_check_branch
        %439 = sbr.rel (%p437) target = $region52
      $region51: #{spatial_frequency_block.2} parent=47 // pred_region
        %p440 = scmp.lt.s32.totalorder %s22, 0
        %s441 = scalar_select %p440, %s22, 0
        %p442 = scmp.lt.s32.totalorder %s23, 1
        %s443 = scalar_select %p442, %s23, 1
        %s444 = smul.addr %s441, 2
        %s445 = sadd.s32 %s443, %s444
        %s446 = smul.addr %s445, 8
        %s447 = scalar_lea.vmem %s5, %s446
      $region52: #{spatial_frequency_block.2} parent=47 // pred_fallthru
        _
    $region48: #{spatial_frequency_block.2} parent=5 // pred_fallthru
      _
  $region6: #{spatial_frequency_block.2} parent=0 // loop_footer
    %s15 = sadd.s32 1, %s11
  $region7: #{spatial_frequency_block.2} parent=0 // loop_footer_branch
    %10 = sbr.rel target = $region3
  $region8: #{spatial_frequency_block.2} parent=0 // loop_exit
    _

// kernel: spatial_frequency_block.3
$region0: #{spatial_frequency_block.3}
  #allocation0 [shape = 'u32[]', space=smem, size = 0x4, offset = 0x4, fixed_abs, tag = 'smem constant byte address 0x4 - core index']
  #allocation1 [shape = 'u32[144,128]{1,0:T(1,128)}', space=vmem, size = 0x12000, scoped, tag = 'internal scratch']
  %s0 = inlined_call_operand.vmem [shape: f32[1,8,256], index: 0, kind: input, shape index: {}]
  %s1 = inlined_call_operand.vmem [shape: f32[1,8,256], index: 1, kind: input, shape index: {}]
  %s2 = inlined_call_operand.vmem [shape: f32[8,8], index: 2, kind: input, shape index: {}]
  %s3 = inlined_call_operand.vmem [shape: f32[8,8], index: 3, kind: input, shape index: {}]
  %s4 = inlined_call_operand.vmem [shape: f32[8,1], index: 4, kind: input, shape index: {}]
  %s5 = inlined_call_operand.vmem [shape: f32[1,8,256], index: 5, kind: output, shape index: {}]
  %s6 = sld [smem:[#allocation0]]
  $region53: #{spatial_frequency_block.3} parent=0
    _
  %s8 = ssub.s32 1, %s6
  %s9 = scalar_select 0, %s8, %s6
  loop: start=0, step=1, limit=4
  $region2: #{spatial_frequency_block.3} parent=0 // loop_pre_header
    _
  $region3: #{spatial_frequency_block.3} parent=0 // loop_header
    %s11 = sphi 0, %s15
    %p12 = scmp.ge.s32.totalorder %s11, 4
    %s18 = sphi 0, %s30
    %s19 = sphi 0, %s26
    %s20 = sphi 0, %s18
    %s21 = sphi 0, %s19
    %s22 = sphi 0, %s20
    %s23 = sphi 0, %s21
    %s35 = sphi 0, %s37
    %s38 = sphi 0, %s35
    %s39 = sphi 0, %s38
    %s55 = sphi 0, %s39
    %s63 = sphi 0, %s65
    %s66 = sphi 0, %s63
    %s67 = sphi 0, %s66
    %s83 = sphi 0, %s67
    %s87 = sphi 0, %s87
    %s89 = sphi 0, %s87
    %s90 = sphi 0, %s89
    %s104 = sphi 0, %s90
    %s108 = sphi 0, %s108
    %s110 = sphi 0, %s108
    %s111 = sphi 0, %s110
    %s125 = sphi 0, %s111
    %s129 = sphi 0, %s129
    %s131 = sphi 0, %s129
    %s132 = sphi 0, %s131
    %s146 = sphi 0, %s132
    %s154 = sphi 0, %s156
    %s157 = sphi 0, %s154
    %s158 = sphi 0, %s157
    %s174 = sphi 0, %s158
  $region4: #{spatial_frequency_block.3} parent=0 // loop_header_branch
    %14 = sbr.rel (%p12) target = $region8
  $region5: #{spatial_frequency_block.3} parent=0 // loop_body
    %s16 = ssub.s32 %s11, 1
    %s17 = ssub.s32 %s11, 2
    %s24 = sadd.s32 1, %s19
    %p25 = scmp.ge.s32.totalorder %s24, 2
    %s26 = scalar_select %p25, 0, %s24
    %s27 = sadd.s32 1, %s18
    %s28 = scalar_select %p25, %s27, %s18
    %p29 = scmp.ge.s32.totalorder %s28, 1
    %s30 = scalar_select %p29, 0, %s28
    %s31 = ssub.s32 %s18, %s30
    %s32 = ssub.s32 %s19, %s26
    %s33 = sor.u32 %s31, %s32
    %p34 = scmp.eq.s32.totalorder %s33, 0
    %s36 = sadd.s32 %s35, 1
    %s37 = scalar_select %p34, %s35, %s36
    %p40 = pneg %p34
    %p41 = scmp.eq.s32.totalorder %s11, 1
    %p42 = por %p40, %p41
    %p43 = scmp.ne.s32.totalorder %s35, %s38
    %p44 = scmp.eq.s32.totalorder %s11, 0
    %p45 = por %p43, %p44
    %p46 = scmp.ne.s32.totalorder %s35, %s38
    %p47 = scmp.eq.s32.totalorder %s16, 1
    %p48 = por %p46, %p47
    %p49 = scmp.ne.s32.totalorder %s38, %s39
    %p50 = scmp.eq.s32.totalorder %s16, 0
    %p51 = por %p49, %p50
    %p52 = scmp.ne.s32.totalorder %s38, %s39
    %p53 = scmp.eq.s32.totalorder %s17, 1
    %p54 = por %p52, %p53
    %p56 = scmp.ne.s32.totalorder %s39, %s55
    %p57 = scmp.eq.s32.totalorder %s17, 0
    %p58 = por %p56, %p57
    %s59 = ssub.s32 %s18, %s30
    %s60 = ssub.s32 %s19, %s26
    %s61 = sor.u32 %s59, %s60
    %p62 = scmp.eq.s32.totalorder %s61, 0
    %s64 = sadd.s32 %s63, 1
    %s65 = scalar_select %p62, %s63, %s64
    %p68 = pneg %p62
    %p69 = scmp.eq.s32.totalorder %s11, 1
    %p70 = por %p68, %p69
    %p71 = scmp.ne.s32.totalorder %s63, %s66
    %p72 = scmp.eq.s32.totalorder %s11, 0
    %p73 = por %p71, %p72
    %p74 = scmp.ne.s32.totalorder %s63, %s66
    %p75 = scmp.eq.s32.totalorder %s16, 1
    %p76 = por %p74, %p75
    %p77 = scmp.ne.s32.totalorder %s66, %s67
    %p78 = scmp.eq.s32.totalorder %s16, 0
    %p79 = por %p77, %p78
    %p80 = scmp.ne.s32.totalorder %s66, %s67
    %p81 = scmp.eq.s32.totalorder %s17, 1
    %p82 = por %p80, %p81
    %p84 = scmp.ne.s32.totalorder %s67, %s83
    %p85 = scmp.eq.s32.totalorder %s17, 0
    %p86 = por %p84, %p85
    %s88 = sadd.s32 %s87, 1
    %p91 = scmp.eq.s32.totalorder %s11, 1
    %p92 = scmp.ne.s32.totalorder %s87, %s89
    %p93 = scmp.eq.s32.totalorder %s11, 0
    %p94 = por %p92, %p93
    %p95 = scmp.ne.s32.totalorder %s87, %s89
    %p96 = scmp.eq.s32.totalorder %s16, 1
    %p97 = por %p95, %p96
    %p98 = scmp.ne.s32.totalorder %s89, %s90
    %p99 = scmp.eq.s32.totalorder %s16, 0
    %p100 = por %p98, %p99
    %p101 = scmp.ne.s32.totalorder %s89, %s90
    %p102 = scmp.eq.s32.totalorder %s17, 1
    %p103 = por %p101, %p102
    %p105 = scmp.ne.s32.totalorder %s90, %s104
    %p106 = scmp.eq.s32.totalorder %s17, 0
    %p107 = por %p105, %p106
    %s109 = sadd.s32 %s108, 1
    %p112 = scmp.eq.s32.totalorder %s11, 1
    %p113 = scmp.ne.s32.totalorder %s108, %s110
    %p114 = scmp.eq.s32.totalorder %s11, 0
    %p115 = por %p113, %p114
    %p116 = scmp.ne.s32.totalorder %s108, %s110
    %p117 = scmp.eq.s32.totalorder %s16, 1
    %p118 = por %p116, %p117
    %p119 = scmp.ne.s32.totalorder %s110, %s111
    %p120 = scmp.eq.s32.totalorder %s16, 0
    %p121 = por %p119, %p120
    %p122 = scmp.ne.s32.totalorder %s110, %s111
    %p123 = scmp.eq.s32.totalorder %s17, 1
    %p124 = por %p122, %p123
    %p126 = scmp.ne.s32.totalorder %s111, %s125
    %p127 = scmp.eq.s32.totalorder %s17, 0
    %p128 = por %p126, %p127
    %s130 = sadd.s32 %s129, 1
    %p133 = scmp.eq.s32.totalorder %s11, 1
    %p134 = scmp.ne.s32.totalorder %s129, %s131
    %p135 = scmp.eq.s32.totalorder %s11, 0
    %p136 = por %p134, %p135
    %p137 = scmp.ne.s32.totalorder %s129, %s131
    %p138 = scmp.eq.s32.totalorder %s16, 1
    %p139 = por %p137, %p138
    %p140 = scmp.ne.s32.totalorder %s131, %s132
    %p141 = scmp.eq.s32.totalorder %s16, 0
    %p142 = por %p140, %p141
    %p143 = scmp.ne.s32.totalorder %s131, %s132
    %p144 = scmp.eq.s32.totalorder %s17, 1
    %p145 = por %p143, %p144
    %p147 = scmp.ne.s32.totalorder %s132, %s146
    %p148 = scmp.eq.s32.totalorder %s17, 0
    %p149 = por %p147, %p148
    %s150 = ssub.s32 %s18, %s30
    %s151 = ssub.s32 %s19, %s26
    %s152 = sor.u32 %s150, %s151
    %p153 = scmp.eq.s32.totalorder %s152, 0
    %s155 = sadd.s32 %s154, 1
    %s156 = scalar_select %p153, %s154, %s155
    %p159 = pneg %p153
    %p160 = scmp.eq.s32.totalorder %s11, 1
    %p161 = por %p159, %p160
    %p162 = scmp.ne.s32.totalorder %s154, %s157
    %p163 = scmp.eq.s32.totalorder %s11, 0
    %p164 = por %p162, %p163
    %p165 = scmp.ne.s32.totalorder %s154, %s157
    %p166 = scmp.eq.s32.totalorder %s16, 1
    %p167 = por %p165, %p166
    %p168 = scmp.ne.s32.totalorder %s157, %s158
    %p169 = scmp.eq.s32.totalorder %s16, 0
    %p170 = por %p168, %p169
    %p171 = scmp.ne.s32.totalorder %s157, %s158
    %p172 = scmp.eq.s32.totalorder %s17, 1
    %p173 = por %p171, %p172
    %p175 = scmp.ne.s32.totalorder %s158, %s174
    %p176 = scmp.eq.s32.totalorder %s17, 0
    %p177 = por %p175, %p176
    %p178 = scmp.le.s32.totalorder 1, %s11
    %p179 = scmp.lt.s32.totalorder %s11, 3
    %p180 = pnand %p178, %p179
    %p181 = pneg %p180
    // Predicated region
    $region9: #{spatial_frequency_block.3} parent=5 // pred_check
      _
    $region10: #{spatial_frequency_block.3} parent=5 // pred_check_branch
      %183 = sbr.rel (%p180) target = $region12
    $region11: #{spatial_frequency_block.3} parent=5 // pred_region
      %s184 = ssub.s32 %s11, 1
      // Predicated region
      $region13: #{spatial_frequency_block.3} parent=11 // pred_check
        %p185 = pneg %p100
      $region14: #{spatial_frequency_block.3} parent=11 // pred_check_branch
        %187 = sbr.rel (%p185) target = $region16
      $region15: #{spatial_frequency_block.3} parent=11 // pred_region
        _
      $region16: #{spatial_frequency_block.3} parent=11 // pred_fallthru
        _
      // Predicated region
      $region17: #{spatial_frequency_block.3} parent=11 // pred_check
        %p188 = pneg %p121
      $region18: #{spatial_frequency_block.3} parent=11 // pred_check_branch
        %190 = sbr.rel (%p188) target = $region20
      $region19: #{spatial_frequency_block.3} parent=11 // pred_region
        _
      $region20: #{spatial_frequency_block.3} parent=11 // pred_fallthru
        _
      // Predicated region
      $region21: #{spatial_frequency_block.3} parent=11 // pred_check
        %p191 = pneg %p142
      $region22: #{spatial_frequency_block.3} parent=11 // pred_check_branch
        %193 = sbr.rel (%p191) target = $region24
      $region23: #{spatial_frequency_block.3} parent=11 // pred_region
        _
      $region24: #{spatial_frequency_block.3} parent=11 // pred_fallthru
        _
    $region12: #{spatial_frequency_block.3} parent=5 // pred_fallthru
      _
    %p194 = scmp.lt.s32.totalorder %s11, 2
    // Predicated region
    $region25: #{spatial_frequency_block.3} parent=5 // pred_check
      %p195 = pneg %p194
    $region26: #{spatial_frequency_block.3} parent=5 // pred_check_branch
      %197 = sbr.rel (%p195) target = $region28
    $region27: #{spatial_frequency_block.3} parent=5 // pred_region
      // Predicated region
      $region29: #{spatial_frequency_block.3} parent=27 // pred_check
        %p198 = pneg %p45
      $region30: #{spatial_frequency_block.3} parent=27 // pred_check_branch
        %200 = sbr.rel (%p198) target = $region32
      $region31: #{spatial_frequency_block.3} parent=27 // pred_region
        %p201 = scmp.lt.s32.totalorder %s18, 0
        %s202 = scalar_select %p201, %s18, 0
        %p203 = scmp.lt.s32.totalorder %s19, 1
        %s204 = scalar_select %p203, %s19, 1
        %s205 = smul.addr %s202, 2
        %s206 = sadd.s32 %s204, %s205
        %s207 = smul.addr %s206, 8
        %s208 = scalar_lea.vmem %s0, %s207
      $region32: #{spatial_frequency_block.3} parent=27 // pred_fallthru
        _
      // Predicated region
      $region33: #{spatial_frequency_block.3} parent=27 // pred_check
        %p209 = pneg %p73
      $region34: #{spatial_frequency_block.3} parent=27 // pred_check_branch
        %211 = sbr.rel (%p209) target = $region36
      $region35: #{spatial_frequency_block.3} parent=27 // pred_region
        %p212 = scmp.lt.s32.totalorder %s18, 0
        %s213 = scalar_select %p212, %s18, 0
        %p214 = scmp.lt.s32.totalorder %s19, 1
        %s215 = scalar_select %p214, %s19, 1
        %s216 = smul.addr %s213, 2
        %s217 = sadd.s32 %s215, %s216
        %s218 = smul.addr %s217, 8
        %s219 = scalar_lea.vmem %s1, %s218
      $region36: #{spatial_frequency_block.3} parent=27 // pred_fallthru
        _
    $region28: #{spatial_frequency_block.3} parent=5 // pred_fallthru
      _
    %p220 = scmp.le.s32.totalorder 1, %s11
    %p221 = scmp.lt.s32.totalorder %s11, 3
    %p222 = pnand %p220, %p221
    %p223 = pneg %p222
    // Predicated region
    $region37: #{spatial_frequency_block.3} parent=5 // pred_check
      _
    $region38: #{spatial_frequency_block.3} parent=5 // pred_check_branch
      %225 = sbr.rel (%p222) target = $region40
    $region39: #{spatial_frequency_block.3} parent=5 // pred_region
      %s226 = ssub.s32 %s11, 1
      %p227 = scmp.lt.s32.totalorder %s20, 0
      %s228 = scalar_select %p227, %s20, 0
      %p229 = scmp.lt.s32.totalorder %s21, 1
      %s230 = scalar_select %p229, %s21, 1
      %s231 = smul.addr %s228, 2
      %s232 = sadd.s32 %s230, %s231
      %s233 = smul.addr %s232, 8
      %s234 = scalar_lea.vmem %s0, %s233
      %p235 = pneg %p51
      %p236 = pneg %p48
      %p237 = scmp.lt.s32.totalorder %s20, 0
      %s238 = scalar_select %p237, %s20, 0
      %p239 = scmp.lt.s32.totalorder %s21, 1
      %s240 = scalar_select %p239, %s21, 1
      %s241 = smul.addr %s238, 2
      %s242 = sadd.s32 %s240, %s241
      %s243 = smul.addr %s242, 8
      %s244 = scalar_lea.vmem %s1, %s243
      %p245 = pneg %p79
      %p246 = pneg %p76
      %p247 = pneg %p100
      %p248 = pneg %p97
      %p249 = pneg %p121
      %p250 = pneg %p118
      %p251 = pneg %p142
      %p252 = pneg %p139
      %p253 = pneg %p170
      %p254 = pneg %p167
      %p255 = scmp.lt.s32.totalorder %s20, 0
      %s256 = scalar_select %p255, %s20, 0
      %p257 = scmp.lt.s32.totalorder %s21, 1
      %s258 = scalar_select %p257, %s21, 1
      %s259 = smul.addr %s256, 2
      %s260 = sadd.s32 %s258, %s259
      %s261 = smul.addr %s260, 8
      %s262 = scalar_lea.vmem %s5, %s261
      %p263 = scmp.lt.s32.totalorder %s20, 0
      %s264 = scalar_select %p263, %s20, 0
      %p265 = scmp.lt.s32.totalorder %s21, 1
      %s266 = scalar_select %p265, %s21, 1
      %s267 = smul.addr %s264, 2
      %s268 = sadd.s32 %s266, %s267
      %s269 = smul.addr %s268, 8
      %s270 = scalar_lea.vmem %s0, %s269
      %p271 = scmp.lt.s32.totalorder %s20, 0
      %s272 = scalar_select %p271, %s20, 0
      %p273 = scmp.lt.s32.totalorder %s21, 1
      %s274 = scalar_select %p273, %s21, 1
      %s275 = smul.addr %s272, 2
      %s276 = sadd.s32 %s274, %s275
      %s277 = smul.addr %s276, 8
      %s278 = scalar_lea.vmem %s1, %s277
      %p279 = scmp.lt.s32.totalorder %s20, 0
      %s280 = scalar_select %p279, %s20, 0
      %p281 = scmp.lt.s32.totalorder %s21, 1
      %s282 = scalar_select %p281, %s21, 1
      %s283 = smul.addr %s280, 2
      %s284 = sadd.s32 %s282, %s283
      %s285 = smul.addr %s284, 8
      %s286 = scalar_lea.vmem %s5, %s285
      %v287 = vld [vmem:[%s2] sm:$0xff]
      %v288 = vld [vmem:[%s270] sm:$0xff]
      %v289 = vld [vmem:[%s3] sm:$0xff]
      %v290 = vld [vmem:[%s278] sm:$0xff]
      %vm291 = vcmask 64512
      %v293 = vsel %vm291, %v289, 0
      %295 = vmatprep.subr.mxu0 0.0
      %296 = vmatpush1.msra.mxu0 0.0
      %297 = vmatprep.subr.mxu0 0.0
      %298 = vmatpush1.msra.mxu0 0.0
      %299 = vmatprep.subr.mxu0 0.0
      %300 = vmatpush1.msra.mxu0 0.0
      %301 = vmatprep.subr.mxu0 0.0
      %302 = vmatpush1.msra.mxu0 0.0
      %303 = vmatprep.subr.mxu0 0.0
      %304 = vmatpush1.msra.mxu0 0.0
      %305 = vmatprep.subr.mxu0 0.0
      %306 = vmatpush1.msra.mxu0 0.0
      %307 = vmatprep.subr.mxu0 0.0
      %308 = vmatpush1.msra.mxu0 0.0
      %309 = vmatprep.subr.mxu0 0.0
      %310 = vmatpush1.msra.mxu0 0.0
      %311 = vmatprep.subr.mxu0 0.0
      %312 = vmatpush1.msra.mxu0 0.0
      %313 = vmatprep.subr.mxu0 0.0
      %314 = vmatpush1.msra.mxu0 0.0
      %315 = vmatprep.subr.mxu0 0.0
      %316 = vmatpush1.msra.mxu0 0.0
      %317 = vmatprep.subr.mxu0 0.0
      %318 = vmatpush1.msra.mxu0 0.0
      %319 = vmatprep.subr.mxu0 0.0
      %320 = vmatpush1.msra.mxu0 0.0
      %321 = vmatprep.subr.mxu0 0.0
      %322 = vmatpush1.msra.mxu0 0.0
      %323 = vmatprep.subr.mxu0 0.0
      %324 = vmatpush1.msra.mxu0 0.0
      %325 = vmatprep.subr.mxu0 0.0
      %326 = vmatpush1.msra.mxu0 %v290
      %327 = vmatprep.subr.mxu0 0.0
      %328 = vmatpush2.msra.mxu0 0.0
      %329 = vmatprep.subr.mxu0 0.0
      %330 = vmatpush2.msra.mxu0 0.0
      %331 = vmatprep.subr.mxu0 0.0
      %332 = vmatpush2.msra.mxu0 0.0
      %333 = vmatprep.subr.mxu0 0.0
      %334 = vmatpush2.msra.mxu0 0.0
      %335 = vmatprep.subr.mxu0 0.0
      %336 = vmatpush2.msra.mxu0 0.0
      %337 = vmatprep.subr.mxu0 0.0
      %338 = vmatpush2.msra.mxu0 0.0
      %339 = vmatprep.subr.mxu0 0.0
      %340 = vmatpush2.msra.mxu0 0.0
      %341 = vmatprep.subr.mxu0 0.0
      %342 = vmatpush2.msra.mxu0 0.0
      %343 = vmatprep.subr.mxu0 0.0
      %344 = vmatpush2.msra.mxu0 0.0
      %345 = vmatprep.subr.mxu0 0.0
      %346 = vmatpush2.msra.mxu0 0.0
      %347 = vmatprep.subr.mxu0 0.0
      %348 = vmatpush2.msra.mxu0 0.0
      %349 = vmatprep.subr.mxu0 0.0
      %350 = vmatpush2.msra.mxu0 0.0
      %351 = vmatprep.subr.mxu0 0.0
      %352 = vmatpush2.msra.mxu0 0.0
      %353 = vmatprep.subr.mxu0 0.0
      %354 = vmatpush2.msra.mxu0 0.0
      %355 = vmatprep.subr.mxu0 0.0
      %356 = vmatpush2.msra.mxu0 0.0
      %357 = vmatprep.subr.mxu0 0.0
      %358 = vmatpush2.msra.mxu0 0.0
      %359 = vmatprep.mubr.f32.mxu0 0.0
      %360 = vmatmul.mubr.f32.gmra.mxu0 %v293
      %v361 = vpop.f32.mrf.mxu0
      %v362 = vadd.f32 0.0, %v361
      %v363 = vpop.f32.mrf.mxu0
      %364 = vdwg.mxu0
      %v366 = vsel %vm291, %v287, 0
      %368 = vmatprep.subr.mxu0 0.0
      %369 = vmatpush1.msra.mxu0 0.0
      %370 = vmatprep.subr.mxu0 0.0
      %371 = vmatpush1.msra.mxu0 0.0
      %372 = vmatprep.subr.mxu0 0.0
      %373 = vmatpush1.msra.mxu0 0.0
      %374 = vmatprep.subr.mxu0 0.0
      %375 = vmatpush1.msra.mxu0 0.0
      %376 = vmatprep.subr.mxu0 0.0
      %377 = vmatpush1.msra.mxu0 0.0
      %378 = vmatprep.subr.mxu0 0.0
      %379 = vmatpush1.msra.mxu0 0.0
      %380 = vmatprep.subr.mxu0 0.0
      %381 = vmatpush1.msra.mxu0 0.0
      %382 = vmatprep.subr.mxu0 0.0
      %383 = vmatpush1.msra.mxu0 0.0
      %384 = vmatprep.subr.mxu0 0.0
      %385 = vmatpush1.msra.mxu0 0.0
      %386 = vmatprep.subr.mxu0 0.0
      %387 = vmatpush1.msra.mxu0 0.0
      %388 = vmatprep.subr.mxu0 0.0
      %389 = vmatpush1.msra.mxu0 0.0
      %390 = vmatprep.subr.mxu0 0.0
      %391 = vmatpush1.msra.mxu0 0.0
      %392 = vmatprep.subr.mxu0 0.0
      %393 = vmatpush1.msra.mxu0 0.0
      %394 = vmatprep.subr.mxu0 0.0
      %395 = vmatpush1.msra.mxu0 0.0
      %396 = vmatprep.subr.mxu0 0.0
      %397 = vmatpush1.msra.mxu0 0.0
      %398 = vmatprep.subr.mxu0 0.0
      %399 = vmatpush1.msra.mxu0 %v288
      %400 = vmatprep.subr.mxu0 0.0
      %401 = vmatpush2.msra.mxu0 0.0
      %402 = vmatprep.subr.mxu0 0.0
      %403 = vmatpush2.msra.mxu0 0.0
      %404 = vmatprep.subr.mxu0 0.0
      %405 = vmatpush2.msra.mxu0 0.0
      %406 = vmatprep.subr.mxu0 0.0
      %407 = vmatpush2.msra.mxu0 0.0
      %408 = vmatprep.subr.mxu0 0.0
      %409 = vmatpush2.msra.mxu0 0.0
      %410 = vmatprep.subr.mxu0 0.0
      %411 = vmatpush2.msra.mxu0 0.0
      %412 = vmatprep.subr.mxu0 0.0
      %413 = vmatpush2.msra.mxu0 0.0
      %414 = vmatprep.subr.mxu0 0.0
      %415 = vmatpush2.msra.mxu0 0.0
      %416 = vmatprep.subr.mxu0 0.0
      %417 = vmatpush2.msra.mxu0 0.0
      %418 = vmatprep.subr.mxu0 0.0
      %419 = vmatpush2.msra.mxu0 0.0
      %420 = vmatprep.subr.mxu0 0.0
      %421 = vmatpush2.msra.mxu0 0.0
      %422 = vmatprep.subr.mxu0 0.0
      %423 = vmatpush2.msra.mxu0 0.0
      %424 = vmatprep.subr.mxu0 0.0
      %425 = vmatpush2.msra.mxu0 0.0
      %426 = vmatprep.subr.mxu0 0.0
      %427 = vmatpush2.msra.mxu0 0.0
      %428 = vmatprep.subr.mxu0 0.0
      %429 = vmatpush2.msra.mxu0 0.0
      %430 = vmatprep.subr.mxu0 0.0
      %431 = vmatpush2.msra.mxu0 0.0
      %432 = vmatprep.mubr.f32.mxu0 0.0
      %433 = vmatmul.mubr.f32.gmra.mxu0 %v366
      %v434 = vpop.f32.mrf.mxu0
      %v435 = vadd.f32 %v362, %v434
      %v436 = vpop.f32.mrf.mxu0
      %437 = vdwg.mxu0
      %v438 = vld [vmem:[%s4] sm:$0xff]
      %440 = vset.pattern.permute.xlu0 0
      %441 = vperm.xlu0 %440, %v438
      %v442 = vpop.permute.xlu0 %441
      %v444 = vadd.f32 %v435, %v442
      %445 = vst [vmem:[%s286] sm:$0xff] %v444
      %p446 = scmp.lt.s32.totalorder %s20, 0
      %s447 = scalar_select %p446, %s20, 0
      %p448 = scmp.lt.s32.totalorder %s21, 1
      %s449 = scalar_select %p448, %s21, 1
      %s450 = smul.addr %s447, 2
      %s451 = sadd.s32 %s449, %s450
      %s452 = smul.addr %s451, 8
      %s453 = scalar_lea.vmem %s5, %s452
      // Predicated region
      $region41: #{spatial_frequency_block.3} parent=39 // pred_check
        %p454 = pneg %p167
      $region42: #{spatial_frequency_block.3} parent=39 // pred_check_branch
        %456 = sbr.rel (%p454) target = $region44
      $region43: #{spatial_frequency_block.3} parent=39 // pred_region
        _
      $region44: #{spatial_frequency_block.3} parent=39 // pred_fallthru
        _
    $region40: #{spatial_frequency_block.3} parent=5 // pred_fallthru
      _
    %p457 = scmp.le.s32.totalorder 2, %s11
    // Predicated region
    $region45: #{spatial_frequency_block.3} parent=5 // pred_check
      %p458 = pneg %p457
    $region46: #{spatial_frequency_block.3} parent=5 // pred_check_branch
      %460 = sbr.rel (%p458) target = $region48
    $region47: #{spatial_frequency_block.3} parent=5 // pred_region
      %s461 = ssub.s32 %s11, 2
      // Predicated region
      $region49: #{spatial_frequency_block.3} parent=47 // pred_check
        %p462 = pneg %p173
      $region50: #{spatial_frequency_block.3} parent=47 // pred_check_branch
        %464 = sbr.rel (%p462) target = $region52
      $region51: #{spatial_frequency_block.3} parent=47 // pred_region
        %p465 = scmp.lt.s32.totalorder %s22, 0
        %s466 = scalar_select %p465, %s22, 0
        %p467 = scmp.lt.s32.totalorder %s23, 1
        %s468 = scalar_select %p467, %s23, 1
        %s469 = smul.addr %s466, 2
        %s470 = sadd.s32 %s468, %s469
        %s471 = smul.addr %s470, 8
        %s472 = scalar_lea.vmem %s5, %s471
      $region52: #{spatial_frequency_block.3} parent=47 // pred_fallthru
        _
    $region48: #{spatial_frequency_block.3} parent=5 // pred_fallthru
      _
  $region6: #{spatial_frequency_block.3} parent=0 // loop_footer
    %s15 = sadd.s32 1, %s11
  $region7: #{spatial_frequency_block.3} parent=0 // loop_footer_branch
    %10 = sbr.rel target = $region3
  $region8: #{spatial_frequency_block.3} parent=0 // loop_exit
    _

</llo_original>
